<compile_context>
chip_gen: v7x
topology: tpu7x:2x2x1
jax: 0.10.0
libtpu: 0.0.40
codegen_flags: <defaults>
</compile_context>

<pallas_src>
import jax
import jax.numpy as jnp
from jax import lax
from jax.experimental import pallas as pl
from jax.experimental.pallas import tpu as pltpu

RADIUS = 3          # fixed by model.__init__ (LGCN_Layer(3, ...))
HIDDEN = 16         # output_dim of every LGCN layer
BN_EPS = 1e-5


def _mm(a, b):
    """Standard (M,K) @ (K,N), f32 accumulation."""
    return lax.dot_general(a, b, (((1,), (0,)), ((), ())),
                           preferred_element_type=jnp.float32)


def _mm_nt(a, b):
    """a @ b.T without materializing the transpose (MXU NT form)."""
    return lax.dot_general(a, b, (((1,), (1,)), ((), ())),
                           preferred_element_type=jnp.float32)


# ---------------------------------------------------------------------------
# Fused whole-model kernel (all LGCN layers + final linear), feature-major.
# ---------------------------------------------------------------------------
def _lgnn_fused_kernel(
    a_g_ref, a_lg_ref, pm_ref,          # bf16: (n_g,n_g), (n_lg,n_lg), (n_g,n_lg)
    gf_ref, lf_ref, gd_ref, ld_ref,     # f32 : (D,n_g), (D,n_lg), (1,n_g), (1,n_lg)
    wg_ref, bg_ref, wl_ref, bl_ref,     # f32 : (L,D,6D), (L,D,1), ...
    bng_w_ref, bng_b_ref, bnl_w_ref, bnl_b_ref,   # f32: (L,D,1) each
    wf_ref, fb_ref,                     # f32 : (OUT,D), (OUT,1)
    out_ref,                            # f32 : (OUT,n_g)
):
    a_g = a_g_ref[...]     # adjacency, A[src, dst] = 1 for edge src->dst
    a_lg = a_lg_ref[...]
    pm = pm_ref[...]       # incidence (n_g, n_lg)
    gf = gf_ref[...]       # feature-major node features
    lf = lf_ref[...]
    gd = gd_ref[...]       # in-degree row vectors (constant across layers)
    ld = ld_ref[...]

    n_layers = wg_ref.shape[0]
    d_out = wg_ref.shape[1]
    half = d_out // 2

    def b16(x):
        return x.astype(jnp.bfloat16)

    def aggrate(h_fm, a_t):
        # radius = 3 -> features after 1, 2 and 4 propagation steps.
        h1 = _mm(b16(h_fm), a_t)
        h2 = _mm(b16(h1), a_t)
        h3 = _mm(b16(h2), a_t)
        h4 = _mm(b16(h3), a_t)
        return h1, h2, h4

    def side(a_t, feat, deg, cross, w_cat, b_sum):
        h1, h2, h4 = aggrate(feat, a_t)
        # Six linear layers fused into one matmul: sublane-axis concat of the
        # six (D, N) pieces -> (6D, N), contracted with (D, 6D) fused weights.
        x_cat = jnp.concatenate([h1, h2, h4, feat, cross, deg * feat], axis=0)
        return _mm(w_cat, x_cat) + b_sum

    def relu_head_bn(x, gamma, beta):
        # torch: relu on the first d_out//2 ROWS of the node-major matrix
        # == the first `half` node columns (lanes) in feature-major layout.
        cols = lax.broadcasted_iota(jnp.int32, x.shape, 1)
        x = jnp.where(cols < half, jnp.maximum(x, 0.0), x)
        # BatchNorm1d (training mode) with one-pass statistics over nodes.
        inv_n = 1.0 / x.shape[1]
        mean = jnp.sum(x, axis=1, keepdims=True) * inv_n
        mean_sq = jnp.sum(x * x, axis=1, keepdims=True) * inv_n
        var = jnp.maximum(mean_sq - mean * mean, 0.0)
        scale = gamma * lax.rsqrt(var + BN_EPS)
        return (x - mean) * scale + beta

    for l in range(n_layers):               # static unroll (L known at trace)
        # cross terms: g side needs pm @ lf (node-major) == lf_fm @ pm^T,
        # lg side needs pm^T @ gf (node-major) == gf_fm @ pm  -> no pm^T input.
        g_cross = _mm_nt(b16(lf), pm)        # (D, n_g)
        lg_cross = _mm(b16(gf), pm)          # (D, n_lg)
        g_sum = side(a_g, gf, gd, g_cross, wg_ref[l], bg_ref[l])
        lg_sum = side(a_lg, lf, ld, lg_cross, wl_ref[l], bl_ref[l])
        gf = relu_head_bn(g_sum, bng_w_ref[l], bng_b_ref[l])
        lf = relu_head_bn(lg_sum, bnl_w_ref[l], bnl_b_ref[l])

    # Final Linear(16, out) fused into the epilogue (feature-major).
    out_ref[...] = _mm(wf_ref[...], gf) + fb_ref[...]


# ---------------------------------------------------------------------------
# One-time parameter packing (hoisted out of the forward path).
# ---------------------------------------------------------------------------
def init_layer_params(key, d_in, d_out):
    """Raw per-layer params, PyTorch-Linear-style uniform init, math convention
    y = x @ w + b.  Weight stack order: [lin0, lin1, lin2, prev, deg, fuse]."""
    ks = jax.random.split(key, 4)
    bound = 1.0 / (d_in ** 0.5)
    u = lambda k, s: jax.random.uniform(k, s, jnp.float32, -bound, bound)
    wg = u(ks[0], (6, d_in, d_out))
    bg = u(ks[1], (6, d_out))
    wl = u(ks[2], (6, d_in, d_out))
    bl = u(ks[3], (6, d_out))
    bn_g_w = jnp.ones((d_out,), jnp.float32)    # BatchNorm1d default init
    bn_g_b = jnp.zeros((d_out,), jnp.float32)
    bn_lg_w = jnp.ones((d_out,), jnp.float32)
    bn_lg_b = jnp.zeros((d_out,), jnp.float32)
    return (wg, bg, wl, bl, bn_g_w, bn_g_b, bn_lg_w, bn_lg_b)


def prepare_params(layer_params, final_w, final_b, d=HIDDEN):
    """Pad d_in -> d, transpose to feature-major, fuse the 6 per-side linears
    into one (d, 6d) weight + pre-summed bias, stack across layers."""
    WG, BG, WL, BL, GW, GB, LW, LB = [], [], [], [], [], [], [], []
    for (wg, bg, wl, bl, bng_w, bng_b, bnl_w, bnl_b) in layer_params:
        d_in = wg.shape[1]
        pad = d - d_in
        wg_p = jnp.pad(wg, ((0, 0), (0, pad), (0, 0)))   # (6, d, d), zero rows exact
        wl_p = jnp.pad(wl, ((0, 0), (0, pad), (0, 0)))
        WG.append(jnp.concatenate([wg_p[i].T for i in range(6)], axis=1))  # (d, 6d)
        WL.append(jnp.concatenate([wl_p[i].T for i in range(6)], axis=1))
        BG.append(jnp.sum(bg, axis=0)[:, None])          # (d, 1), pre-summed bias
        BL.append(jnp.sum(bl, axis=0)[:, None])
        GW.append(bng_w[:, None]); GB.append(bng_b[:, None])
        LW.append(bnl_w[:, None]); LB.append(bnl_b[:, None])
    stack = lambda xs: jnp.stack(xs, axis=0)
    wf = final_w.T                                       # (out_dim, d)
    fb = final_b[:, None]                                # (out_dim, 1)
    return (stack(WG), stack(BG), stack(WL), stack(BL),
            stack(GW), stack(GB), stack(LW), stack(LB), wf, fb)


# ---------------------------------------------------------------------------
# Forward wrapper (single pallas_call).
# ---------------------------------------------------------------------------
@jax.jit
def lgnn_forward(a_g, a_lg, pm_pd, packed_params):
    (wg, bg, wl, bl, bng_w, bng_b, bnl_w, bnl_b, wf, fb) = packed_params
    n_g, n_lg = a_g.shape[0], a_lg.shape[0]
    d = wg.shape[1]
    out_dim = wf.shape[0]

    # 0/1 structure matrices are exact in bf16 -> halve HBM/VMEM footprint.
    a_g_b = a_g.astype(jnp.bfloat16)
    a_lg_b = a_lg.astype(jnp.bfloat16)
    pm_b = pm_pd.astype(jnp.bfloat16)

    # in-degrees (A[src, dst] convention -> column sums), feature-major rows.
    g_deg = jnp.sum(a_g, axis=0)[None, :]                # (1, n_g)
    lg_deg = jnp.sum(a_lg, axis=0)[None, :]              # (1, n_lg)
    gf0 = jnp.pad(g_deg, ((0, d - 1), (0, 0)))           # (d, n_g), zero-padded feat
    lf0 = jnp.pad(lg_deg, ((0, d - 1), (0, 0)))

    args = (a_g_b, a_lg_b, pm_b, gf0, lf0, g_deg, lg_deg,
            wg, bg, wl, bl, bng_w, bng_b, bnl_w, bnl_b, wf, fb)

    vmem = pl.BlockSpec(memory_space=pltpu.MemorySpace.VMEM)
    vmem_bytes = sum(int(a.size) * a.dtype.itemsize for a in args)
    vmem_bytes += out_dim * n_g * 4
    vmem_limit = min(2 * vmem_bytes + (2 << 20), 48 * 1024 * 1024)

    out_fm = pl.pallas_call(
        _lgnn_fused_kernel,
        out_shape=jax.ShapeDtypeStruct((out_dim, n_g), jnp.float32),
        in_specs=[vmem] * len(args),
        out_specs=vmem,
        compiler_params=pltpu.CompilerParams(vmem_limit_bytes=int(vmem_limit)),
    )(*args)
    # back to node-major (n_g, out_dim), as the torch model returns.
    return out_fm.T
    # NOTE: for graphs too large to hold whole-graph A/H in VMEM, the recursive
    # multi-hop aggregation would need a row-tiled multi-pass grid; at the
    # sizes exercised here the fully-fused single program is the faster choice.


# ---------------------------------------------------------------------------
# Demo / smoke test
# ---------------------------------------------------------------------------
if __name__ == "__main__":
    key = jax.random.PRNGKey(0)
    k_ag, k_alg, k_pm, k_l0, k_l1, k_fw, k_fb = jax.random.split(key, 7)

    N_G, N_LG = 16, 32        # nodes in g / nodes in line graph (edges of g)
    HIDDEN_NUM = 1            # -> 2 LGCN layers total
    OUTPUT_DIM = 4

    # deterministic dense "graphs": A[src, dst] = 1 for edge src->dst
    a_g = (jax.random.uniform(k_ag, (N_G, N_G)) < 0.3).astype(jnp.float32)
    a_g = a_g * (1.0 - jnp.eye(N_G, dtype=jnp.float32))   # no self loops
    a_lg = (jax.random.uniform(k_alg, (N_LG, N_LG)) < 0.2).astype(jnp.float32)
    pm_pd = (jax.random.uniform(k_pm, (N_G, N_LG)) < 0.25).astype(jnp.float32)
    # TODO(synk): DGL graph objects / scipy-sparse pm_pd are represented as
    # dense 0/1 adjacency & incidence matrices; message passing == dense matmul.

    layer_params = [
        init_layer_params(k_l0, 1, HIDDEN),       # first layer: input_dim = 1
        init_layer_params(k_l1, HIDDEN, HIDDEN),  # hidden layer
    ]
    fbound = 1.0 / (HIDDEN ** 0.5)
    final_w = jax.random.uniform(k_fw, (HIDDEN, OUTPUT_DIM), jnp.float32,
                                 -fbound, fbound)
    final_b = jax.random.uniform(k_fb, (OUTPUT_DIM,), jnp.float32,
                                 -fbound, fbound)

    packed = prepare_params(layer_params, final_w, final_b)
    out = lgnn_forward(a_g, a_lg, pm_pd, packed)
    out = jax.block_until_ready(out)
    assert out.shape == (N_G, OUTPUT_DIM) and out.dtype == jnp.float32
    print("KERNEL_OK")
</pallas_src>

<mosaic_0001>
module attributes {stable_mosaic.version = 11 : i64} {
  func.func @_lgnn_fused_kernel(%arg0: memref<16x16xbf16, #tpu.memory_space<vmem>>, %arg1: memref<32x32xbf16, #tpu.memory_space<vmem>>, %arg2: memref<16x32xbf16, #tpu.memory_space<vmem>>, %arg3: memref<16x16xf32, #tpu.memory_space<vmem>>, %arg4: memref<16x32xf32, #tpu.memory_space<vmem>>, %arg5: memref<1x16xf32, #tpu.memory_space<vmem>>, %arg6: memref<1x32xf32, #tpu.memory_space<vmem>>, %arg7: memref<2x16x96xf32, #tpu.memory_space<vmem>>, %arg8: memref<2x16x1xf32, #tpu.memory_space<vmem>>, %arg9: memref<2x16x96xf32, #tpu.memory_space<vmem>>, %arg10: memref<2x16x1xf32, #tpu.memory_space<vmem>>, %arg11: memref<2x16x1xf32, #tpu.memory_space<vmem>>, %arg12: memref<2x16x1xf32, #tpu.memory_space<vmem>>, %arg13: memref<2x16x1xf32, #tpu.memory_space<vmem>>, %arg14: memref<2x16x1xf32, #tpu.memory_space<vmem>>, %arg15: memref<4x16xf32, #tpu.memory_space<vmem>>, %arg16: memref<4x1xf32, #tpu.memory_space<vmem>>, %arg17: memref<4x16xf32, #tpu.memory_space<vmem>>) attributes {dimension_semantics = [], scalar_prefetch = 0 : i64, scratch_operands = 0 : i64, tpu.core_type = #tpu.core_type<tc>} {
    %c0 = arith.constant 0 : index
    %c0_0 = arith.constant 0 : index
    %0 = vector.load %arg0[%c0, %c0_0] : memref<16x16xbf16, #tpu.memory_space<vmem>>, vector<16x16xbf16>
    %c0_1 = arith.constant 0 : index
    %c0_2 = arith.constant 0 : index
    %1 = vector.load %arg1[%c0_1, %c0_2] : memref<32x32xbf16, #tpu.memory_space<vmem>>, vector<32x32xbf16>
    %c0_3 = arith.constant 0 : index
    %c0_4 = arith.constant 0 : index
    %2 = vector.load %arg2[%c0_3, %c0_4] : memref<16x32xbf16, #tpu.memory_space<vmem>>, vector<16x32xbf16>
    %c0_5 = arith.constant 0 : index
    %c0_6 = arith.constant 0 : index
    %3 = vector.load %arg3[%c0_5, %c0_6] : memref<16x16xf32, #tpu.memory_space<vmem>>, vector<16x16xf32>
    %c0_7 = arith.constant 0 : index
    %c0_8 = arith.constant 0 : index
    %4 = vector.load %arg4[%c0_7, %c0_8] : memref<16x32xf32, #tpu.memory_space<vmem>>, vector<16x32xf32>
    %c0_9 = arith.constant 0 : index
    %c0_10 = arith.constant 0 : index
    %5 = vector.load %arg5[%c0_9, %c0_10] : memref<1x16xf32, #tpu.memory_space<vmem>>, vector<1x16xf32>
    %c0_11 = arith.constant 0 : index
    %c0_12 = arith.constant 0 : index
    %6 = vector.load %arg6[%c0_11, %c0_12] : memref<1x32xf32, #tpu.memory_space<vmem>>, vector<1x32xf32>
    %7 = arith.truncf %4 : vector<16x32xf32> to vector<16x32xbf16>
    %cst = arith.constant dense<0.000000e+00> : vector<16x16xf32>
    %8 = tpu.matmul %7, %2, %cst {dimension_numbers = #tpu.dot_dimension_numbers<[1], [1], [0], [0], [0, 0, 1, 0], [], []>} : vector<16x32xbf16>, vector<16x32xbf16>, vector<16x16xf32> -> vector<16x16xf32>
    %9 = arith.truncf %3 : vector<16x16xf32> to vector<16x16xbf16>
    %cst_13 = arith.constant dense<0.000000e+00> : vector<16x32xf32>
    %10 = tpu.matmul %9, %2, %cst_13 {dimension_numbers = #tpu.dot_dimension_numbers<[1], [0], [0], [1], [0, 0, 1, 1], [], []>} : vector<16x16xbf16>, vector<16x32xbf16>, vector<16x32xf32> -> vector<16x32xf32>
    %c0_14 = arith.constant 0 : index
    %c0_15 = arith.constant 0 : index
    %c0_16 = arith.constant 0 : index
    %11 = vector.load %arg7[%c0_14, %c0_15, %c0_16] : memref<2x16x96xf32, #tpu.memory_space<vmem>>, vector<1x16x96xf32>
    %12 = vector.shape_cast %11 : vector<1x16x96xf32> to vector<16x96xf32>
    %c0_17 = arith.constant 0 : index
    %c0_18 = arith.constant 0 : index
    %c0_19 = arith.constant 0 : index
    %13 = vector.load %arg8[%c0_17, %c0_18, %c0_19] : memref<2x16x1xf32, #tpu.memory_space<vmem>>, vector<1x16x1xf32>
    %14 = vector.shape_cast %13 : vector<1x16x1xf32> to vector<16x1xf32>
    %15 = arith.truncf %3 : vector<16x16xf32> to vector<16x16xbf16>
    %cst_20 = arith.constant dense<0.000000e+00> : vector<16x16xf32>
    %16 = tpu.matmul %15, %0, %cst_20 {dimension_numbers = #tpu.dot_dimension_numbers<[1], [0], [0], [1], [0, 0, 1, 1], [], []>} : vector<16x16xbf16>, vector<16x16xbf16>, vector<16x16xf32> -> vector<16x16xf32>
    %17 = arith.truncf %16 : vector<16x16xf32> to vector<16x16xbf16>
    %cst_21 = arith.constant dense<0.000000e+00> : vector<16x16xf32>
    %18 = tpu.matmul %17, %0, %cst_21 {dimension_numbers = #tpu.dot_dimension_numbers<[1], [0], [0], [1], [0, 0, 1, 1], [], []>} : vector<16x16xbf16>, vector<16x16xbf16>, vector<16x16xf32> -> vector<16x16xf32>
    %19 = arith.truncf %18 : vector<16x16xf32> to vector<16x16xbf16>
    %cst_22 = arith.constant dense<0.000000e+00> : vector<16x16xf32>
    %20 = tpu.matmul %19, %0, %cst_22 {dimension_numbers = #tpu.dot_dimension_numbers<[1], [0], [0], [1], [0, 0, 1, 1], [], []>} : vector<16x16xbf16>, vector<16x16xbf16>, vector<16x16xf32> -> vector<16x16xf32>
    %21 = arith.truncf %20 : vector<16x16xf32> to vector<16x16xbf16>
    %cst_23 = arith.constant dense<0.000000e+00> : vector<16x16xf32>
    %22 = tpu.matmul %21, %0, %cst_23 {dimension_numbers = #tpu.dot_dimension_numbers<[1], [0], [0], [1], [0, 0, 1, 1], [], []>} : vector<16x16xbf16>, vector<16x16xbf16>, vector<16x16xf32> -> vector<16x16xf32>
    %23 = vector.broadcast %5 : vector<1x16xf32> to vector<16x16xf32>
    %24 = arith.mulf %23, %3 : vector<16x16xf32>
    %25 = tpu.concatenate %16, %18, %22, %3, %8, %24 in 0 : vector<16x16xf32>, vector<16x16xf32>, vector<16x16xf32>, vector<16x16xf32>, vector<16x16xf32>, vector<16x16xf32> -> vector<96x16xf32>
    %cst_24 = arith.constant dense<0.000000e+00> : vector<16x16xf32>
    %26 = tpu.matmul %12, %25, %cst_24 {dimension_numbers = #tpu.dot_dimension_numbers<[1], [0], [0], [1], [0, 0, 1, 1], [], []>} : vector<16x96xf32>, vector<96x16xf32>, vector<16x16xf32> -> vector<16x16xf32>
    %27 = vector.broadcast %14 : vector<16x1xf32> to vector<16x16xf32>
    %28 = arith.addf %26, %27 : vector<16x16xf32>
    %c0_25 = arith.constant 0 : index
    %c0_26 = arith.constant 0 : index
    %c0_27 = arith.constant 0 : index
    %29 = vector.load %arg9[%c0_25, %c0_26, %c0_27] : memref<2x16x96xf32, #tpu.memory_space<vmem>>, vector<1x16x96xf32>
    %30 = vector.shape_cast %29 : vector<1x16x96xf32> to vector<16x96xf32>
    %c0_28 = arith.constant 0 : index
    %c0_29 = arith.constant 0 : index
    %c0_30 = arith.constant 0 : index
    %31 = vector.load %arg10[%c0_28, %c0_29, %c0_30] : memref<2x16x1xf32, #tpu.memory_space<vmem>>, vector<1x16x1xf32>
    %32 = vector.shape_cast %31 : vector<1x16x1xf32> to vector<16x1xf32>
    %33 = arith.truncf %4 : vector<16x32xf32> to vector<16x32xbf16>
    %cst_31 = arith.constant dense<0.000000e+00> : vector<16x32xf32>
    %34 = tpu.matmul %33, %1, %cst_31 {dimension_numbers = #tpu.dot_dimension_numbers<[1], [0], [0], [1], [0, 0, 1, 1], [], []>} : vector<16x32xbf16>, vector<32x32xbf16>, vector<16x32xf32> -> vector<16x32xf32>
    %35 = arith.truncf %34 : vector<16x32xf32> to vector<16x32xbf16>
    %cst_32 = arith.constant dense<0.000000e+00> : vector<16x32xf32>
    %36 = tpu.matmul %35, %1, %cst_32 {dimension_numbers = #tpu.dot_dimension_numbers<[1], [0], [0], [1], [0, 0, 1, 1], [], []>} : vector<16x32xbf16>, vector<32x32xbf16>, vector<16x32xf32> -> vector<16x32xf32>
    %37 = arith.truncf %36 : vector<16x32xf32> to vector<16x32xbf16>
    %cst_33 = arith.constant dense<0.000000e+00> : vector<16x32xf32>
    %38 = tpu.matmul %37, %1, %cst_33 {dimension_numbers = #tpu.dot_dimension_numbers<[1], [0], [0], [1], [0, 0, 1, 1], [], []>} : vector<16x32xbf16>, vector<32x32xbf16>, vector<16x32xf32> -> vector<16x32xf32>
    %39 = arith.truncf %38 : vector<16x32xf32> to vector<16x32xbf16>
    %cst_34 = arith.constant dense<0.000000e+00> : vector<16x32xf32>
    %40 = tpu.matmul %39, %1, %cst_34 {dimension_numbers = #tpu.dot_dimension_numbers<[1], [0], [0], [1], [0, 0, 1, 1], [], []>} : vector<16x32xbf16>, vector<32x32xbf16>, vector<16x32xf32> -> vector<16x32xf32>
    %41 = vector.broadcast %6 : vector<1x32xf32> to vector<16x32xf32>
    %42 = arith.mulf %41, %4 : vector<16x32xf32>
    %43 = tpu.concatenate %34, %36, %40, %4, %10, %42 in 0 : vector<16x32xf32>, vector<16x32xf32>, vector<16x32xf32>, vector<16x32xf32>, vector<16x32xf32>, vector<16x32xf32> -> vector<96x32xf32>
    %cst_35 = arith.constant dense<0.000000e+00> : vector<16x32xf32>
    %44 = tpu.matmul %30, %43, %cst_35 {dimension_numbers = #tpu.dot_dimension_numbers<[1], [0], [0], [1], [0, 0, 1, 1], [], []>} : vector<16x96xf32>, vector<96x32xf32>, vector<16x32xf32> -> vector<16x32xf32>
    %45 = vector.broadcast %32 : vector<16x1xf32> to vector<16x32xf32>
    %46 = arith.addf %44, %45 : vector<16x32xf32>
    %c0_36 = arith.constant 0 : index
    %c0_37 = arith.constant 0 : index
    %c0_38 = arith.constant 0 : index
    %47 = vector.load %arg11[%c0_36, %c0_37, %c0_38] : memref<2x16x1xf32, #tpu.memory_space<vmem>>, vector<1x16x1xf32>
    %48 = vector.shape_cast %47 : vector<1x16x1xf32> to vector<16x1xf32>
    %c0_39 = arith.constant 0 : index
    %c0_40 = arith.constant 0 : index
    %c0_41 = arith.constant 0 : index
    %49 = vector.load %arg12[%c0_39, %c0_40, %c0_41] : memref<2x16x1xf32, #tpu.memory_space<vmem>>, vector<1x16x1xf32>
    %50 = vector.shape_cast %49 : vector<1x16x1xf32> to vector<16x1xf32>
    %51 = tpu.iota {dimensions = array<i32: 1>} : vector<16x16xi32>
    %c8_i32 = arith.constant 8 : i32
    %52 = vector.broadcast %c8_i32 : i32 to vector<16x16xi32>
    %53 = arith.cmpi slt, %51, %52 : vector<16x16xi32>
    %cst_42 = arith.constant 0.000000e+00 : f32
    %54 = vector.broadcast %cst_42 : f32 to vector<16x16xf32>
    %55 = arith.maximumf %28, %54 : vector<16x16xf32>
    %56 = arith.select %53, %55, %28 : vector<16x16xi1>, vector<16x16xf32>
    %cst_43 = arith.constant dense<0.000000e+00> : vector<16xf32>
    %57 = vector.multi_reduction <add>, %56, %cst_43 [1] : vector<16x16xf32> to vector<16xf32>
    %58 = vector.shape_cast %57 : vector<16xf32> to vector<16x1xf32>
    %cst_44 = arith.constant 6.250000e-02 : f32
    %59 = vector.broadcast %cst_44 : f32 to vector<16x1xf32>
    %60 = arith.mulf %58, %59 : vector<16x1xf32>
    %61 = arith.mulf %56, %56 : vector<16x16xf32>
    %cst_45 = arith.constant dense<0.000000e+00> : vector<16xf32>
    %62 = vector.multi_reduction <add>, %61, %cst_45 [1] : vector<16x16xf32> to vector<16xf32>
    %63 = vector.shape_cast %62 : vector<16xf32> to vector<16x1xf32>
    %cst_46 = arith.constant 6.250000e-02 : f32
    %64 = vector.broadcast %cst_46 : f32 to vector<16x1xf32>
    %65 = arith.mulf %63, %64 : vector<16x1xf32>
    %66 = arith.mulf %60, %60 : vector<16x1xf32>
    %67 = arith.subf %65, %66 : vector<16x1xf32>
    %cst_47 = arith.constant 0.000000e+00 : f32
    %68 = vector.broadcast %cst_47 : f32 to vector<16x1xf32>
    %69 = arith.maximumf %67, %68 : vector<16x1xf32>
    %cst_48 = arith.constant 9.99999974E-6 : f32
    %70 = vector.broadcast %cst_48 : f32 to vector<16x1xf32>
    %71 = arith.addf %69, %70 : vector<16x1xf32>
    %72 = math.rsqrt %71 : vector<16x1xf32>
    %73 = arith.mulf %48, %72 : vector<16x1xf32>
    %74 = vector.broadcast %60 : vector<16x1xf32> to vector<16x16xf32>
    %75 = arith.subf %56, %74 : vector<16x16xf32>
    %76 = vector.broadcast %73 : vector<16x1xf32> to vector<16x16xf32>
    %77 = arith.mulf %75, %76 : vector<16x16xf32>
    %78 = vector.broadcast %50 : vector<16x1xf32> to vector<16x16xf32>
    %79 = arith.addf %77, %78 : vector<16x16xf32>
    %c0_49 = arith.constant 0 : index
    %c0_50 = arith.constant 0 : index
    %c0_51 = arith.constant 0 : index
    %80 = vector.load %arg13[%c0_49, %c0_50, %c0_51] : memref<2x16x1xf32, #tpu.memory_space<vmem>>, vector<1x16x1xf32>
    %81 = vector.shape_cast %80 : vector<1x16x1xf32> to vector<16x1xf32>
    %c0_52 = arith.constant 0 : index
    %c0_53 = arith.constant 0 : index
    %c0_54 = arith.constant 0 : index
    %82 = vector.load %arg14[%c0_52, %c0_53, %c0_54] : memref<2x16x1xf32, #tpu.memory_space<vmem>>, vector<1x16x1xf32>
    %83 = vector.shape_cast %82 : vector<1x16x1xf32> to vector<16x1xf32>
    %84 = tpu.iota {dimensions = array<i32: 1>} : vector<16x32xi32>
    %c8_i32_55 = arith.constant 8 : i32
    %85 = vector.broadcast %c8_i32_55 : i32 to vector<16x32xi32>
    %86 = arith.cmpi slt, %84, %85 : vector<16x32xi32>
    %cst_56 = arith.constant 0.000000e+00 : f32
    %87 = vector.broadcast %cst_56 : f32 to vector<16x32xf32>
    %88 = arith.maximumf %46, %87 : vector<16x32xf32>
    %89 = arith.select %86, %88, %46 : vector<16x32xi1>, vector<16x32xf32>
    %cst_57 = arith.constant dense<0.000000e+00> : vector<16xf32>
    %90 = vector.multi_reduction <add>, %89, %cst_57 [1] : vector<16x32xf32> to vector<16xf32>
    %91 = vector.shape_cast %90 : vector<16xf32> to vector<16x1xf32>
    %cst_58 = arith.constant 3.125000e-02 : f32
    %92 = vector.broadcast %cst_58 : f32 to vector<16x1xf32>
    %93 = arith.mulf %91, %92 : vector<16x1xf32>
    %94 = arith.mulf %89, %89 : vector<16x32xf32>
    %cst_59 = arith.constant dense<0.000000e+00> : vector<16xf32>
    %95 = vector.multi_reduction <add>, %94, %cst_59 [1] : vector<16x32xf32> to vector<16xf32>
    %96 = vector.shape_cast %95 : vector<16xf32> to vector<16x1xf32>
    %cst_60 = arith.constant 3.125000e-02 : f32
    %97 = vector.broadcast %cst_60 : f32 to vector<16x1xf32>
    %98 = arith.mulf %96, %97 : vector<16x1xf32>
    %99 = arith.mulf %93, %93 : vector<16x1xf32>
    %100 = arith.subf %98, %99 : vector<16x1xf32>
    %cst_61 = arith.constant 0.000000e+00 : f32
    %101 = vector.broadcast %cst_61 : f32 to vector<16x1xf32>
    %102 = arith.maximumf %100, %101 : vector<16x1xf32>
    %cst_62 = arith.constant 9.99999974E-6 : f32
    %103 = vector.broadcast %cst_62 : f32 to vector<16x1xf32>
    %104 = arith.addf %102, %103 : vector<16x1xf32>
    %105 = math.rsqrt %104 : vector<16x1xf32>
    %106 = arith.mulf %81, %105 : vector<16x1xf32>
    %107 = vector.broadcast %93 : vector<16x1xf32> to vector<16x32xf32>
    %108 = arith.subf %89, %107 : vector<16x32xf32>
    %109 = vector.broadcast %106 : vector<16x1xf32> to vector<16x32xf32>
    %110 = arith.mulf %108, %109 : vector<16x32xf32>
    %111 = vector.broadcast %83 : vector<16x1xf32> to vector<16x32xf32>
    %112 = arith.addf %110, %111 : vector<16x32xf32>
    %113 = arith.truncf %112 : vector<16x32xf32> to vector<16x32xbf16>
    %cst_63 = arith.constant dense<0.000000e+00> : vector<16x16xf32>
    %114 = tpu.matmul %113, %2, %cst_63 {dimension_numbers = #tpu.dot_dimension_numbers<[1], [1], [0], [0], [0, 0, 1, 0], [], []>} : vector<16x32xbf16>, vector<16x32xbf16>, vector<16x16xf32> -> vector<16x16xf32>
    %c1 = arith.constant 1 : index
    %c0_64 = arith.constant 0 : index
    %c0_65 = arith.constant 0 : index
    %115 = vector.load %arg7[%c1, %c0_64, %c0_65] : memref<2x16x96xf32, #tpu.memory_space<vmem>>, vector<1x16x96xf32>
    %116 = vector.shape_cast %115 : vector<1x16x96xf32> to vector<16x96xf32>
    %c1_66 = arith.constant 1 : index
    %c0_67 = arith.constant 0 : index
    %c0_68 = arith.constant 0 : index
    %117 = vector.load %arg8[%c1_66, %c0_67, %c0_68] : memref<2x16x1xf32, #tpu.memory_space<vmem>>, vector<1x16x1xf32>
    %118 = vector.shape_cast %117 : vector<1x16x1xf32> to vector<16x1xf32>
    %119 = arith.truncf %79 : vector<16x16xf32> to vector<16x16xbf16>
    %cst_69 = arith.constant dense<0.000000e+00> : vector<16x16xf32>
    %120 = tpu.matmul %119, %0, %cst_69 {dimension_numbers = #tpu.dot_dimension_numbers<[1], [0], [0], [1], [0, 0, 1, 1], [], []>} : vector<16x16xbf16>, vector<16x16xbf16>, vector<16x16xf32> -> vector<16x16xf32>
    %121 = arith.truncf %120 : vector<16x16xf32> to vector<16x16xbf16>
    %cst_70 = arith.constant dense<0.000000e+00> : vector<16x16xf32>
    %122 = tpu.matmul %121, %0, %cst_70 {dimension_numbers = #tpu.dot_dimension_numbers<[1], [0], [0], [1], [0, 0, 1, 1], [], []>} : vector<16x16xbf16>, vector<16x16xbf16>, vector<16x16xf32> -> vector<16x16xf32>
    %123 = arith.truncf %122 : vector<16x16xf32> to vector<16x16xbf16>
    %cst_71 = arith.constant dense<0.000000e+00> : vector<16x16xf32>
    %124 = tpu.matmul %123, %0, %cst_71 {dimension_numbers = #tpu.dot_dimension_numbers<[1], [0], [0], [1], [0, 0, 1, 1], [], []>} : vector<16x16xbf16>, vector<16x16xbf16>, vector<16x16xf32> -> vector<16x16xf32>
    %125 = arith.truncf %124 : vector<16x16xf32> to vector<16x16xbf16>
    %cst_72 = arith.constant dense<0.000000e+00> : vector<16x16xf32>
    %126 = tpu.matmul %125, %0, %cst_72 {dimension_numbers = #tpu.dot_dimension_numbers<[1], [0], [0], [1], [0, 0, 1, 1], [], []>} : vector<16x16xbf16>, vector<16x16xbf16>, vector<16x16xf32> -> vector<16x16xf32>
    %127 = vector.broadcast %5 : vector<1x16xf32> to vector<16x16xf32>
    %128 = arith.mulf %127, %79 : vector<16x16xf32>
    %129 = tpu.concatenate %120, %122, %126, %79, %114, %128 in 0 : vector<16x16xf32>, vector<16x16xf32>, vector<16x16xf32>, vector<16x16xf32>, vector<16x16xf32>, vector<16x16xf32> -> vector<96x16xf32>
    %cst_73 = arith.constant dense<0.000000e+00> : vector<16x16xf32>
    %130 = tpu.matmul %116, %129, %cst_73 {dimension_numbers = #tpu.dot_dimension_numbers<[1], [0], [0], [1], [0, 0, 1, 1], [], []>} : vector<16x96xf32>, vector<96x16xf32>, vector<16x16xf32> -> vector<16x16xf32>
    %131 = vector.broadcast %118 : vector<16x1xf32> to vector<16x16xf32>
    %132 = arith.addf %130, %131 : vector<16x16xf32>
    %c1_74 = arith.constant 1 : index
    %c0_75 = arith.constant 0 : index
    %c0_76 = arith.constant 0 : index
    %133 = vector.load %arg11[%c1_74, %c0_75, %c0_76] : memref<2x16x1xf32, #tpu.memory_space<vmem>>, vector<1x16x1xf32>
    %134 = vector.shape_cast %133 : vector<1x16x1xf32> to vector<16x1xf32>
    %c1_77 = arith.constant 1 : index
    %c0_78 = arith.constant 0 : index
    %c0_79 = arith.constant 0 : index
    %135 = vector.load %arg12[%c1_77, %c0_78, %c0_79] : memref<2x16x1xf32, #tpu.memory_space<vmem>>, vector<1x16x1xf32>
    %136 = vector.shape_cast %135 : vector<1x16x1xf32> to vector<16x1xf32>
    %137 = tpu.iota {dimensions = array<i32: 1>} : vector<16x16xi32>
    %c8_i32_80 = arith.constant 8 : i32
    %138 = vector.broadcast %c8_i32_80 : i32 to vector<16x16xi32>
    %139 = arith.cmpi slt, %137, %138 : vector<16x16xi32>
    %cst_81 = arith.constant 0.000000e+00 : f32
    %140 = vector.broadcast %cst_81 : f32 to vector<16x16xf32>
    %141 = arith.maximumf %132, %140 : vector<16x16xf32>
    %142 = arith.select %139, %141, %132 : vector<16x16xi1>, vector<16x16xf32>
    %cst_82 = arith.constant dense<0.000000e+00> : vector<16xf32>
    %143 = vector.multi_reduction <add>, %142, %cst_82 [1] : vector<16x16xf32> to vector<16xf32>
    %144 = vector.shape_cast %143 : vector<16xf32> to vector<16x1xf32>
    %cst_83 = arith.constant 6.250000e-02 : f32
    %145 = vector.broadcast %cst_83 : f32 to vector<16x1xf32>
    %146 = arith.mulf %144, %145 : vector<16x1xf32>
    %147 = arith.mulf %142, %142 : vector<16x16xf32>
    %cst_84 = arith.constant dense<0.000000e+00> : vector<16xf32>
    %148 = vector.multi_reduction <add>, %147, %cst_84 [1] : vector<16x16xf32> to vector<16xf32>
    %149 = vector.shape_cast %148 : vector<16xf32> to vector<16x1xf32>
    %cst_85 = arith.constant 6.250000e-02 : f32
    %150 = vector.broadcast %cst_85 : f32 to vector<16x1xf32>
    %151 = arith.mulf %149, %150 : vector<16x1xf32>
    %152 = arith.mulf %146, %146 : vector<16x1xf32>
    %153 = arith.subf %151, %152 : vector<16x1xf32>
    %cst_86 = arith.constant 0.000000e+00 : f32
    %154 = vector.broadcast %cst_86 : f32 to vector<16x1xf32>
    %155 = arith.maximumf %153, %154 : vector<16x1xf32>
    %cst_87 = arith.constant 9.99999974E-6 : f32
    %156 = vector.broadcast %cst_87 : f32 to vector<16x1xf32>
    %157 = arith.addf %155, %156 : vector<16x1xf32>
    %158 = math.rsqrt %157 : vector<16x1xf32>
    %159 = arith.mulf %134, %158 : vector<16x1xf32>
    %160 = vector.broadcast %146 : vector<16x1xf32> to vector<16x16xf32>
    %161 = arith.subf %142, %160 : vector<16x16xf32>
    %162 = vector.broadcast %159 : vector<16x1xf32> to vector<16x16xf32>
    %163 = arith.mulf %161, %162 : vector<16x16xf32>
    %164 = vector.broadcast %136 : vector<16x1xf32> to vector<16x16xf32>
    %165 = arith.addf %163, %164 : vector<16x16xf32>
    %c0_88 = arith.constant 0 : index
    %c0_89 = arith.constant 0 : index
    %166 = vector.load %arg15[%c0_88, %c0_89] : memref<4x16xf32, #tpu.memory_space<vmem>>, vector<4x16xf32>
    %cst_90 = arith.constant dense<0.000000e+00> : vector<4x16xf32>
    %167 = tpu.matmul %166, %165, %cst_90 {dimension_numbers = #tpu.dot_dimension_numbers<[1], [0], [0], [1], [0, 0, 1, 1], [], []>} : vector<4x16xf32>, vector<16x16xf32>, vector<4x16xf32> -> vector<4x16xf32>
    %c0_91 = arith.constant 0 : index
    %c0_92 = arith.constant 0 : index
    %168 = vector.load %arg16[%c0_91, %c0_92] : memref<4x1xf32, #tpu.memory_space<vmem>>, vector<4x1xf32>
    %169 = vector.broadcast %168 : vector<4x1xf32> to vector<4x16xf32>
    %170 = arith.addf %167, %169 : vector<4x16xf32>
    %c0_93 = arith.constant 0 : index
    %c0_94 = arith.constant 0 : index
    %171 = vector.load %arg17[%c0_93, %c0_94] : memref<4x16xf32, #tpu.memory_space<vmem>>, vector<4x16xf32>
    tpu.vector_store %arg17[%c0_93, %c0_94], %170 {strides = array<i32>} : memref<4x16xf32, #tpu.memory_space<vmem>>, vector<4x16xf32>,
    return
  }
}

</mosaic_0001>

<llo_original>
// kernel: lgnn_forward.1
$region0: #{lgnn_forward.1}
  #allocation0 [shape = 'u32[]', space=smem, size = 0x4, offset = 0x4, fixed_abs, tag = 'smem constant byte address 0x4 - core index']
  #allocation1 [shape = 'u32[144,128]{1,0:T(1,128)}', space=vmem, size = 0x12000, scoped, tag = 'internal scratch']
  %s0 = inlined_call_operand.vmem [shape: bf16[16,16], index: 0, kind: input, shape index: {}]
  %s1 = inlined_call_operand.vmem [shape: bf16[32,32], index: 1, kind: input, shape index: {}]
  %s2 = inlined_call_operand.vmem [shape: bf16[16,32], index: 2, kind: input, shape index: {}]
  %s3 = inlined_call_operand.vmem [shape: f32[16,16], index: 3, kind: input, shape index: {}]
  %s4 = inlined_call_operand.vmem [shape: f32[16,32], index: 4, kind: input, shape index: {}]
  %s5 = inlined_call_operand.vmem [shape: f32[1,16], index: 5, kind: input, shape index: {}]
  %s6 = inlined_call_operand.vmem [shape: f32[1,32], index: 6, kind: input, shape index: {}]
  %s7 = inlined_call_operand.vmem [shape: f32[2,16,96], index: 7, kind: input, shape index: {}]
  %s8 = inlined_call_operand.vmem [shape: f32[2,16,1], index: 8, kind: input, shape index: {}]
  %s9 = inlined_call_operand.vmem [shape: f32[2,16,96], index: 9, kind: input, shape index: {}]
  %s10 = inlined_call_operand.vmem [shape: f32[2,16,1], index: 10, kind: input, shape index: {}]
  %s11 = inlined_call_operand.vmem [shape: f32[2,16,1], index: 11, kind: input, shape index: {}]
  %s12 = inlined_call_operand.vmem [shape: f32[2,16,1], index: 12, kind: input, shape index: {}]
  %s13 = inlined_call_operand.vmem [shape: f32[2,16,1], index: 13, kind: input, shape index: {}]
  %s14 = inlined_call_operand.vmem [shape: f32[2,16,1], index: 14, kind: input, shape index: {}]
  %s15 = inlined_call_operand.vmem [shape: f32[4,16], index: 15, kind: input, shape index: {}]
  %s16 = inlined_call_operand.vmem [shape: f32[4,1], index: 16, kind: input, shape index: {}]
  %s17 = inlined_call_operand.hbm [shape: f32[4,16], index: 17, kind: output, shape index: {}]
  %s18 = sld [smem:[#allocation0]]
  $region78: #{lgnn_forward.1} parent=0
    _
  %s20 = ssub.s32 1, %s18
  %s21 = scalar_select 0, %s20, %s18
  $region1: #{lgnn_forward.1} parent=0
    #allocation2 [shape = 'u8[2048]{0}', space=vmem, size = 0x800, scoped, tag = 'output window, operand 0, single buffered']
    #allocation3 [shape = 's32[1]{0}', space=sflag, size = 0x4, scoped, tag = 'scoped memory for lgnn_forward.1']
    %22 = vsyncpa [#allocation3], 0
    // Predicated region
    $region2: #{lgnn_forward.1} parent=1 // pred_check
      _
    $region3: #{lgnn_forward.1} parent=1 // pred_check_branch
      %24 = sbr.rel (0) target = $region5
    $region4: #{lgnn_forward.1} parent=1 // pred_region
      _
    $region5: #{lgnn_forward.1} parent=1 // pred_fallthru
      _
    // Predicated region
    $region6: #{lgnn_forward.1} parent=1 // pred_check
      _
    $region7: #{lgnn_forward.1} parent=1 // pred_check_branch
      %26 = sbr.rel (0) target = $region9
    $region8: #{lgnn_forward.1} parent=1 // pred_region
      _
    $region9: #{lgnn_forward.1} parent=1 // pred_fallthru
      _
    // Predicated region
    $region10: #{lgnn_forward.1} parent=1 // pred_check
      _
    $region11: #{lgnn_forward.1} parent=1 // pred_check_branch
      %28 = sbr.rel (0) target = $region13
    $region12: #{lgnn_forward.1} parent=1 // pred_region
      _
    $region13: #{lgnn_forward.1} parent=1 // pred_fallthru
      _
    // Predicated region
    $region14: #{lgnn_forward.1} parent=1 // pred_check
      _
    $region15: #{lgnn_forward.1} parent=1 // pred_check_branch
      %30 = sbr.rel (0) target = $region17
    $region16: #{lgnn_forward.1} parent=1 // pred_region
      _
    $region17: #{lgnn_forward.1} parent=1 // pred_fallthru
      _
    // Predicated region
    $region18: #{lgnn_forward.1} parent=1 // pred_check
      _
    $region19: #{lgnn_forward.1} parent=1 // pred_check_branch
      %32 = sbr.rel (0) target = $region21
    $region20: #{lgnn_forward.1} parent=1 // pred_region
      _
    $region21: #{lgnn_forward.1} parent=1 // pred_fallthru
      _
    // Predicated region
    $region22: #{lgnn_forward.1} parent=1 // pred_check
      _
    $region23: #{lgnn_forward.1} parent=1 // pred_check_branch
      %34 = sbr.rel (0) target = $region25
    $region24: #{lgnn_forward.1} parent=1 // pred_region
      _
    $region25: #{lgnn_forward.1} parent=1 // pred_fallthru
      _
    // Predicated region
    $region26: #{lgnn_forward.1} parent=1 // pred_check
      _
    $region27: #{lgnn_forward.1} parent=1 // pred_check_branch
      %36 = sbr.rel (0) target = $region29
    $region28: #{lgnn_forward.1} parent=1 // pred_region
      _
    $region29: #{lgnn_forward.1} parent=1 // pred_fallthru
      _
    // Predicated region
    $region30: #{lgnn_forward.1} parent=1 // pred_check
      _
    $region31: #{lgnn_forward.1} parent=1 // pred_check_branch
      %38 = sbr.rel (0) target = $region33
    $region32: #{lgnn_forward.1} parent=1 // pred_region
      _
    $region33: #{lgnn_forward.1} parent=1 // pred_fallthru
      _
    // Predicated region
    $region34: #{lgnn_forward.1} parent=1 // pred_check
      _
    $region35: #{lgnn_forward.1} parent=1 // pred_check_branch
      %40 = sbr.rel (0) target = $region37
    $region36: #{lgnn_forward.1} parent=1 // pred_region
      _
    $region37: #{lgnn_forward.1} parent=1 // pred_fallthru
      _
    // Predicated region
    $region38: #{lgnn_forward.1} parent=1 // pred_check
      _
    $region39: #{lgnn_forward.1} parent=1 // pred_check_branch
      %42 = sbr.rel (0) target = $region41
    $region40: #{lgnn_forward.1} parent=1 // pred_region
      _
    $region41: #{lgnn_forward.1} parent=1 // pred_fallthru
      _
    // Predicated region
    $region42: #{lgnn_forward.1} parent=1 // pred_check
      _
    $region43: #{lgnn_forward.1} parent=1 // pred_check_branch
      %44 = sbr.rel (0) target = $region45
    $region44: #{lgnn_forward.1} parent=1 // pred_region
      _
    $region45: #{lgnn_forward.1} parent=1 // pred_fallthru
      _
    // Predicated region
    $region46: #{lgnn_forward.1} parent=1 // pred_check
      _
    $region47: #{lgnn_forward.1} parent=1 // pred_check_branch
      %46 = sbr.rel (0) target = $region49
    $region48: #{lgnn_forward.1} parent=1 // pred_region
      _
    $region49: #{lgnn_forward.1} parent=1 // pred_fallthru
      _
    // Predicated region
    $region50: #{lgnn_forward.1} parent=1 // pred_check
      _
    $region51: #{lgnn_forward.1} parent=1 // pred_check_branch
      %48 = sbr.rel (0) target = $region53
    $region52: #{lgnn_forward.1} parent=1 // pred_region
      _
    $region53: #{lgnn_forward.1} parent=1 // pred_fallthru
      _
    // Predicated region
    $region54: #{lgnn_forward.1} parent=1 // pred_check
      _
    $region55: #{lgnn_forward.1} parent=1 // pred_check_branch
      %50 = sbr.rel (0) target = $region57
    $region56: #{lgnn_forward.1} parent=1 // pred_region
      _
    $region57: #{lgnn_forward.1} parent=1 // pred_fallthru
      _
    // Predicated region
    $region58: #{lgnn_forward.1} parent=1 // pred_check
      _
    $region59: #{lgnn_forward.1} parent=1 // pred_check_branch
      %52 = sbr.rel (0) target = $region61
    $region60: #{lgnn_forward.1} parent=1 // pred_region
      _
    $region61: #{lgnn_forward.1} parent=1 // pred_fallthru
      _
    // Predicated region
    $region62: #{lgnn_forward.1} parent=1 // pred_check
      _
    $region63: #{lgnn_forward.1} parent=1 // pred_check_branch
      %54 = sbr.rel (0) target = $region65
    $region64: #{lgnn_forward.1} parent=1 // pred_region
      _
    $region65: #{lgnn_forward.1} parent=1 // pred_fallthru
      _
    // Predicated region
    $region66: #{lgnn_forward.1} parent=1 // pred_check
      _
    $region67: #{lgnn_forward.1} parent=1 // pred_check_branch
      %56 = sbr.rel (0) target = $region69
    $region68: #{lgnn_forward.1} parent=1 // pred_region
      _
    $region69: #{lgnn_forward.1} parent=1 // pred_fallthru
      _
    %v58 = vld [vmem:[%s0] sm:$0xf]
    %v59 = vld [vmem:[%s0 + $0x4] sm:$0xf]
    %v60 = vld [vmem:[%s1] sm:$0xf]
    %v61 = vld [vmem:[%s1 + $0x4] sm:$0xf]
    %v62 = vld [vmem:[%s1 + $0x8] sm:$0xf]
    %v63 = vld [vmem:[%s1 + $0xc] sm:$0xf]
    %v64 = vld [vmem:[%s2] sm:$0xf]
    %v65 = vld [vmem:[%s2 + $0x4] sm:$0xf]
    %v66 = vld [vmem:[%s3] sm:$0xff]
    %v67 = vld [vmem:[%s3 + $0x8] sm:$0xff]
    %v68 = vld [vmem:[%s4] sm:$0xff]
    %v69 = vld [vmem:[%s4 + $0x8] sm:$0xff]
    %v70 = vld [vmem:[%s5] sm:$0x1]
    %v71 = vld [vmem:[%s6] sm:$0x1]
    %v72 = vpack.c.bf16 %v69, %v68
    %v75 = vunpack.c.l.b16 %v64
    %v76 = vunpack.c.l.b16 %v65
    %v77 = vpack.c.b16 %v76, %v75
    %vm78 = vcmask 261120
    %v80 = vsel %vm78, %v72, 0
    %v83 = vsel %vm78, %v77, 0
    %85 = vmatprep.subr.bf16.mxu0 0
    %86 = vmatpush1.bf16.xpose.msra.mxu0 %v83
    %87 = vmatprep.subr.bf16.mxu0 0
    %88 = vmatpush1.bf16.xpose.msra.mxu0 0
    %89 = vmatprep.subr.bf16.mxu0 0
    %90 = vmatpush1.bf16.xpose.msra.mxu0 0
    %91 = vmatprep.subr.bf16.mxu0 0
    %92 = vmatpush1.bf16.xpose.msra.mxu0 0
    %93 = vmatprep.subr.bf16.mxu0 0
    %94 = vmatpush1.bf16.xpose.msra.mxu0 0
    %95 = vmatprep.subr.bf16.mxu0 0
    %96 = vmatpush1.bf16.xpose.msra.mxu0 0
    %97 = vmatprep.subr.bf16.mxu0 0
    %98 = vmatpush1.bf16.xpose.msra.mxu0 0
    %99 = vmatprep.subr.bf16.mxu0 0
    %100 = vmatpush1.bf16.xpose.msra.mxu0 0
    %101 = vmatprep.subr.bf16.mxu0 0
    %102 = vmatpush1.bf16.xpose.msra.mxu0 0
    %103 = vmatprep.subr.bf16.mxu0 0
    %104 = vmatpush1.bf16.xpose.msra.mxu0 0
    %105 = vmatprep.subr.bf16.mxu0 0
    %106 = vmatpush1.bf16.xpose.msra.mxu0 0
    %107 = vmatprep.subr.bf16.mxu0 0
    %108 = vmatpush1.bf16.xpose.msra.mxu0 0
    %109 = vmatprep.subr.bf16.mxu0 0
    %110 = vmatpush1.bf16.xpose.msra.mxu0 0
    %111 = vmatprep.subr.bf16.mxu0 0
    %112 = vmatpush1.bf16.xpose.msra.mxu0 0
    %113 = vmatprep.subr.bf16.mxu0 0
    %114 = vmatpush1.bf16.xpose.msra.mxu0 0
    %115 = vmatprep.subr.bf16.mxu0 0
    %116 = vmatpush1.bf16.xpose.msra.mxu0 0
    %117 = vmatprep.mubr.bf16.mxu0 0
    %118 = vmatmul.mubr.bf16.gmra.mrb[0].mxu0 %v80
    %v119 = vpop.f32.mrb[0].mxu0
    %v120 = vadd.f32 0.0, %v119
    %v121 = vpop.f32.mrb[0].mxu0
    %v122 = vpop.f32.mrb[0].mxu0
    %v123 = vadd.f32 0.0, %v122
    %v124 = vpop.f32.mrb[0].mxu0
    %125 = vdwg.mxu0
    %v126 = vpack.c.bf16 %v67, %v66
    %vm128 = vcmask 130048
    %v130 = vsel %vm128, %v126, 0
    %132 = vmatprep.subr.bf16.mxu0 0
    %133 = vmatpush1.bf16.msra.mxu0 %v77
    %134 = vmatprep.subr.bf16.mxu0 0
    %135 = vmatpush1.bf16.msra.mxu0 0
    %136 = vmatprep.subr.bf16.mxu0 0
    %137 = vmatpush1.bf16.msra.mxu0 0
    %138 = vmatprep.subr.bf16.mxu0 0
    %139 = vmatpush1.bf16.msra.mxu0 0
    %140 = vmatprep.subr.bf16.mxu0 0
    %141 = vmatpush1.bf16.msra.mxu0 0
    %142 = vmatprep.subr.bf16.mxu0 0
    %143 = vmatpush1.bf16.msra.mxu0 0
    %144 = vmatprep.subr.bf16.mxu0 0
    %145 = vmatpush1.bf16.msra.mxu0 0
    %146 = vmatprep.subr.bf16.mxu0 0
    %147 = vmatpush1.bf16.msra.mxu0 0
    %148 = vmatprep.subr.bf16.mxu0 0
    %149 = vmatpush1.bf16.msra.mxu0 0
    %150 = vmatprep.subr.bf16.mxu0 0
    %151 = vmatpush1.bf16.msra.mxu0 0
    %152 = vmatprep.subr.bf16.mxu0 0
    %153 = vmatpush1.bf16.msra.mxu0 0
    %154 = vmatprep.subr.bf16.mxu0 0
    %155 = vmatpush1.bf16.msra.mxu0 0
    %156 = vmatprep.subr.bf16.mxu0 0
    %157 = vmatpush1.bf16.msra.mxu0 0
    %158 = vmatprep.subr.bf16.mxu0 0
    %159 = vmatpush1.bf16.msra.mxu0 0
    %160 = vmatprep.subr.bf16.mxu0 0
    %161 = vmatpush1.bf16.msra.mxu0 0
    %162 = vmatprep.subr.bf16.mxu0 0
    %163 = vmatpush1.bf16.msra.mxu0 0
    %164 = vmatprep.mubr.bf16.mxu0 0
    %165 = vmatmul.mubr.bf16.gmra.mrb[0].mxu0 %v130
    %v166 = vpop.f32.mrb[0].mxu0
    %v167 = vadd.f32 0.0, %v166
    %v168 = vpop.f32.mrb[0].mxu0
    %v169 = vpop.f32.mrb[0].mxu0
    %v170 = vadd.f32 0.0, %v169
    %v171 = vpop.f32.mrb[0].mxu0
    %172 = vdwg.mxu0
    %v173 = vld [vmem:[%s7] sm:$0xff]
    %v174 = vld [vmem:[%s7 + $0x8] sm:$0xff]
    %v175 = vld [vmem:[%s8] sm:$0xff]
    %v176 = vld [vmem:[%s8 + $0x8] sm:$0xff]
    %v179 = vunpack.c.l.b16 %v58
    %v180 = vunpack.c.l.b16 %v59
    %v181 = vpack.c.b16 %v180, %v179
    %183 = vmatprep.subr.bf16.mxu0 0
    %184 = vmatpush1.bf16.msra.mxu0 %v181
    %185 = vmatprep.subr.bf16.mxu0 0
    %186 = vmatpush1.bf16.msra.mxu0 0
    %187 = vmatprep.subr.bf16.mxu0 0
    %188 = vmatpush1.bf16.msra.mxu0 0
    %189 = vmatprep.subr.bf16.mxu0 0
    %190 = vmatpush1.bf16.msra.mxu0 0
    %191 = vmatprep.subr.bf16.mxu0 0
    %192 = vmatpush1.bf16.msra.mxu0 0
    %193 = vmatprep.subr.bf16.mxu0 0
    %194 = vmatpush1.bf16.msra.mxu0 0
    %195 = vmatprep.subr.bf16.mxu0 0
    %196 = vmatpush1.bf16.msra.mxu0 0
    %197 = vmatprep.subr.bf16.mxu0 0
    %198 = vmatpush1.bf16.msra.mxu0 0
    %199 = vmatprep.subr.bf16.mxu0 0
    %200 = vmatpush1.bf16.msra.mxu0 0
    %201 = vmatprep.subr.bf16.mxu0 0
    %202 = vmatpush1.bf16.msra.mxu0 0
    %203 = vmatprep.subr.bf16.mxu0 0
    %204 = vmatpush1.bf16.msra.mxu0 0
    %205 = vmatprep.subr.bf16.mxu0 0
    %206 = vmatpush1.bf16.msra.mxu0 0
    %207 = vmatprep.subr.bf16.mxu0 0
    %208 = vmatpush1.bf16.msra.mxu0 0
    %209 = vmatprep.subr.bf16.mxu0 0
    %210 = vmatpush1.bf16.msra.mxu0 0
    %211 = vmatprep.subr.bf16.mxu0 0
    %212 = vmatpush1.bf16.msra.mxu0 0
    %213 = vmatprep.subr.bf16.mxu0 0
    %214 = vmatpush1.bf16.msra.mxu0 0
    %215 = vmatprep.mubr.bf16.mxu0 0
    %216 = vmatmul.mubr.bf16.gmra.mrb[0].mxu0 %v130
    %v217 = vpop.f32.mrb[0].mxu0
    %v218 = vadd.f32 0.0, %v217
    %v219 = vpop.f32.mrb[0].mxu0
    %v220 = vpop.f32.mrb[0].mxu0
    %v221 = vadd.f32 0.0, %v220
    %v222 = vpop.f32.mrb[0].mxu0
    %223 = vdwg.mxu0
    %v224 = vpack.c.bf16 %v221, %v218
    %v226 = vsel %vm128, %v224, 0
    %228 = vmatprep.subr.bf16.mxu0 0
    %229 = vmatpush1.bf16.msra.mxu0 %v181
    %230 = vmatprep.subr.bf16.mxu0 0
    %231 = vmatpush1.bf16.msra.mxu0 0
    %232 = vmatprep.subr.bf16.mxu0 0
    %233 = vmatpush1.bf16.msra.mxu0 0
    %234 = vmatprep.subr.bf16.mxu0 0
    %235 = vmatpush1.bf16.msra.mxu0 0
    %236 = vmatprep.subr.bf16.mxu0 0
    %237 = vmatpush1.bf16.msra.mxu0 0
    %238 = vmatprep.subr.bf16.mxu0 0
    %239 = vmatpush1.bf16.msra.mxu0 0
    %240 = vmatprep.subr.bf16.mxu0 0
    %241 = vmatpush1.bf16.msra.mxu0 0
    %242 = vmatprep.subr.bf16.mxu0 0
    %243 = vmatpush1.bf16.msra.mxu0 0
    %244 = vmatprep.subr.bf16.mxu0 0
    %245 = vmatpush1.bf16.msra.mxu0 0
    %246 = vmatprep.subr.bf16.mxu0 0
    %247 = vmatpush1.bf16.msra.mxu0 0
    %248 = vmatprep.subr.bf16.mxu0 0
    %249 = vmatpush1.bf16.msra.mxu0 0
    %250 = vmatprep.subr.bf16.mxu0 0
    %251 = vmatpush1.bf16.msra.mxu0 0
    %252 = vmatprep.subr.bf16.mxu0 0
    %253 = vmatpush1.bf16.msra.mxu0 0
    %254 = vmatprep.subr.bf16.mxu0 0
    %255 = vmatpush1.bf16.msra.mxu0 0
    %256 = vmatprep.subr.bf16.mxu0 0
    %257 = vmatpush1.bf16.msra.mxu0 0
    %258 = vmatprep.subr.bf16.mxu0 0
    %259 = vmatpush1.bf16.msra.mxu0 0
    %260 = vmatprep.mubr.bf16.mxu0 0
    %261 = vmatmul.mubr.bf16.gmra.mrb[0].mxu0 %v226
    %v262 = vpop.f32.mrb[0].mxu0
    %v263 = vadd.f32 0.0, %v262
    %v264 = vpop.f32.mrb[0].mxu0
    %v265 = vpop.f32.mrb[0].mxu0
    %v266 = vadd.f32 0.0, %v265
    %v267 = vpop.f32.mrb[0].mxu0
    %268 = vdwg.mxu0
    %v269 = vpack.c.bf16 %v266, %v263
    %v271 = vsel %vm128, %v269, 0
    %273 = vmatprep.subr.bf16.mxu0 0
    %274 = vmatpush1.bf16.msra.mxu0 %v181
    %275 = vmatprep.subr.bf16.mxu0 0
    %276 = vmatpush1.bf16.msra.mxu0 0
    %277 = vmatprep.subr.bf16.mxu0 0
    %278 = vmatpush1.bf16.msra.mxu0 0
    %279 = vmatprep.subr.bf16.mxu0 0
    %280 = vmatpush1.bf16.msra.mxu0 0
    %281 = vmatprep.subr.bf16.mxu0 0
    %282 = vmatpush1.bf16.msra.mxu0 0
    %283 = vmatprep.subr.bf16.mxu0 0
    %284 = vmatpush1.bf16.msra.mxu0 0
    %285 = vmatprep.subr.bf16.mxu0 0
    %286 = vmatpush1.bf16.msra.mxu0 0
    %287 = vmatprep.subr.bf16.mxu0 0
    %288 = vmatpush1.bf16.msra.mxu0 0
    %289 = vmatprep.subr.bf16.mxu0 0
    %290 = vmatpush1.bf16.msra.mxu0 0
    %291 = vmatprep.subr.bf16.mxu0 0
    %292 = vmatpush1.bf16.msra.mxu0 0
    %293 = vmatprep.subr.bf16.mxu0 0
    %294 = vmatpush1.bf16.msra.mxu0 0
    %295 = vmatprep.subr.bf16.mxu0 0
    %296 = vmatpush1.bf16.msra.mxu0 0
    %297 = vmatprep.subr.bf16.mxu0 0
    %298 = vmatpush1.bf16.msra.mxu0 0
    %299 = vmatprep.subr.bf16.mxu0 0
    %300 = vmatpush1.bf16.msra.mxu0 0
    %301 = vmatprep.subr.bf16.mxu0 0
    %302 = vmatpush1.bf16.msra.mxu0 0
    %303 = vmatprep.subr.bf16.mxu0 0
    %304 = vmatpush1.bf16.msra.mxu0 0
    %305 = vmatprep.mubr.bf16.mxu0 0
    %306 = vmatmul.mubr.bf16.gmra.mrb[0].mxu0 %v271
    %v307 = vpop.f32.mrb[0].mxu0
    %v308 = vadd.f32 0.0, %v307
    %v309 = vpop.f32.mrb[0].mxu0
    %v310 = vpop.f32.mrb[0].mxu0
    %v311 = vadd.f32 0.0, %v310
    %v312 = vpop.f32.mrb[0].mxu0
    %313 = vdwg.mxu0
    %v314 = vpack.c.bf16 %v311, %v308
    %v316 = vsel %vm128, %v314, 0
    %318 = vmatprep.subr.bf16.mxu0 0
    %319 = vmatpush1.bf16.msra.mxu0 %v181
    %320 = vmatprep.subr.bf16.mxu0 0
    %321 = vmatpush1.bf16.msra.mxu0 0
    %322 = vmatprep.subr.bf16.mxu0 0
    %323 = vmatpush1.bf16.msra.mxu0 0
    %324 = vmatprep.subr.bf16.mxu0 0
    %325 = vmatpush1.bf16.msra.mxu0 0
    %326 = vmatprep.subr.bf16.mxu0 0
    %327 = vmatpush1.bf16.msra.mxu0 0
    %328 = vmatprep.subr.bf16.mxu0 0
    %329 = vmatpush1.bf16.msra.mxu0 0
    %330 = vmatprep.subr.bf16.mxu0 0
    %331 = vmatpush1.bf16.msra.mxu0 0
    %332 = vmatprep.subr.bf16.mxu0 0
    %333 = vmatpush1.bf16.msra.mxu0 0
    %334 = vmatprep.subr.bf16.mxu0 0
    %335 = vmatpush1.bf16.msra.mxu0 0
    %336 = vmatprep.subr.bf16.mxu0 0
    %337 = vmatpush1.bf16.msra.mxu0 0
    %338 = vmatprep.subr.bf16.mxu0 0
    %339 = vmatpush1.bf16.msra.mxu0 0
    %340 = vmatprep.subr.bf16.mxu0 0
    %341 = vmatpush1.bf16.msra.mxu0 0
    %342 = vmatprep.subr.bf16.mxu0 0
    %343 = vmatpush1.bf16.msra.mxu0 0
    %344 = vmatprep.subr.bf16.mxu0 0
    %345 = vmatpush1.bf16.msra.mxu0 0
    %346 = vmatprep.subr.bf16.mxu0 0
    %347 = vmatpush1.bf16.msra.mxu0 0
    %348 = vmatprep.subr.bf16.mxu0 0
    %349 = vmatpush1.bf16.msra.mxu0 0
    %350 = vmatprep.mubr.bf16.mxu0 0
    %351 = vmatmul.mubr.bf16.gmra.mrb[0].mxu0 %v316
    %v352 = vpop.f32.mrb[0].mxu0
    %v353 = vadd.f32 0.0, %v352
    %v354 = vpop.f32.mrb[0].mxu0
    %v355 = vpop.f32.mrb[0].mxu0
    %v356 = vadd.f32 0.0, %v355
    %v357 = vpop.f32.mrb[0].mxu0
    %358 = vdwg.mxu0
    %v360 = vlaneseq
    %v361 = vshrl.u32 %v360, 7
    %v362 = vsub.s32 0, %v361
    %v363 = vrot.slane %v70, %v362
    %v365 = vmul.f32 %v363, %v66
    %v366 = vmul.f32 %v363, %v67
    %368 = vset.pattern.permute.xlu0 0
    %369 = vperm.xlu0 %368, %v175
    %v370 = vpop.permute.xlu0 %369
    %373 = vset.pattern.permute.xlu0 0
    %374 = vperm.xlu0 %373, %v176
    %v375 = vpop.permute.xlu0 %374
    %vm377 = vcmask 785408
    %v379 = vsel %vm377, %v173, 0
    %v382 = vsel %vm377, %v174, 0
    %384 = vmatprep.subr.mxu0 0.0
    %385 = vmatpush1.msra.mxu0 %v218
    %386 = vmatprep.subr.mxu0 0.0
    %387 = vmatpush1.msra.mxu0 %v221
    %388 = vmatprep.subr.mxu0 0.0
    %389 = vmatpush1.msra.mxu0 %v263
    %390 = vmatprep.subr.mxu0 0.0
    %391 = vmatpush1.msra.mxu0 %v266
    %392 = vmatprep.subr.mxu0 0.0
    %393 = vmatpush1.msra.mxu0 %v353
    %394 = vmatprep.subr.mxu0 0.0
    %395 = vmatpush1.msra.mxu0 %v356
    %396 = vmatprep.subr.mxu0 0.0
    %397 = vmatpush1.msra.mxu0 %v66
    %398 = vmatprep.subr.mxu0 0.0
    %399 = vmatpush1.msra.mxu0 %v67
    %400 = vmatprep.subr.mxu0 0.0
    %401 = vmatpush1.msra.mxu0 %v120
    %402 = vmatprep.subr.mxu0 0.0
    %403 = vmatpush1.msra.mxu0 %v123
    %404 = vmatprep.subr.mxu0 0.0
    %405 = vmatpush1.msra.mxu0 %v365
    %406 = vmatprep.subr.mxu0 0.0
    %407 = vmatpush1.msra.mxu0 %v366
    %408 = vmatprep.subr.mxu0 0.0
    %409 = vmatpush1.msra.mxu0 0.0
    %410 = vmatprep.subr.mxu0 0.0
    %411 = vmatpush1.msra.mxu0 0.0
    %412 = vmatprep.subr.mxu0 0.0
    %413 = vmatpush1.msra.mxu0 0.0
    %414 = vmatprep.subr.mxu0 0.0
    %415 = vmatpush1.msra.mxu0 0.0
    %416 = vmatprep.subr.mxu0 0.0
    %417 = vmatpush1.msra.mxu0 0.0
    %418 = vmatprep.subr.mxu0 0.0
    %419 = vmatpush1.msra.mxu0 0.0
    %420 = vmatprep.subr.mxu0 0.0
    %421 = vmatpush1.msra.mxu0 0.0
    %422 = vmatprep.subr.mxu0 0.0
    %423 = vmatpush1.msra.mxu0 0.0
    %424 = vmatprep.subr.mxu0 0.0
    %425 = vmatpush1.msra.mxu0 0.0
    %426 = vmatprep.subr.mxu0 0.0
    %427 = vmatpush1.msra.mxu0 0.0
    %428 = vmatprep.subr.mxu0 0.0
    %429 = vmatpush1.msra.mxu0 0.0
    %430 = vmatprep.subr.mxu0 0.0
    %431 = vmatpush1.msra.mxu0 0.0
    %432 = vmatprep.subr.mxu0 0.0
    %433 = vmatpush1.msra.mxu0 0.0
    %434 = vmatprep.subr.mxu0 0.0
    %435 = vmatpush1.msra.mxu0 0.0
    %436 = vmatprep.subr.mxu0 0.0
    %437 = vmatpush1.msra.mxu0 0.0
    %438 = vmatprep.subr.mxu0 0.0
    %439 = vmatpush1.msra.mxu0 0.0
    %440 = vmatprep.subr.mxu0 0.0
    %441 = vmatpush1.msra.mxu0 0.0
    %442 = vmatprep.subr.mxu0 0.0
    %443 = vmatpush1.msra.mxu0 0.0
    %444 = vmatprep.subr.mxu0 0.0
    %445 = vmatpush1.msra.mxu0 0.0
    %446 = vmatprep.subr.mxu0 0.0
    %447 = vmatpush1.msra.mxu0 0.0
    %448 = vmatprep.mubr.f32.mxu0 0.0
    %449 = vmatmul.mubr.f32.gmra.mrb[0].mxu0 %v379
    %v450 = vpop.f32.mrb[0].mxu0
    %v451 = vadd.f32 %v370, %v450
    %v452 = vpop.f32.mrb[0].mxu0
    %453 = vmatprep.mubr.f32.mxu0 0.0
    %454 = vmatmul.mubr.f32.gmra.mrb[0].mxu0 %v382
    %v455 = vpop.f32.mrb[0].mxu0
    %v456 = vadd.f32 %v375, %v455
    %v457 = vpop.f32.mrb[0].mxu0
    %458 = vdwg.mxu0
    %v459 = vld [vmem:[%s9] sm:$0xff]
    %v460 = vld [vmem:[%s9 + $0x8] sm:$0xff]
    %v461 = vld [vmem:[%s10] sm:$0xff]
    %v462 = vld [vmem:[%s10 + $0x8] sm:$0xff]
    %v467 = vunpack.c.l.b16 %v60
    %v468 = vunpack.c.l.b16 %v61
    %v469 = vunpack.c.l.b16 %v62
    %v470 = vunpack.c.l.b16 %v63
    %v471 = vpack.c.b16 %v468, %v467
    %v472 = vpack.c.b16 %v470, %v469
    %475 = vmatprep.subr.bf16.mxu0 0
    %476 = vmatpush1.bf16.msra.mxu0 %v471
    %477 = vmatprep.subr.bf16.mxu0 0
    %478 = vmatpush1.bf16.msra.mxu0 %v472
    %479 = vmatprep.subr.bf16.mxu0 0
    %480 = vmatpush1.bf16.msra.mxu0 0
    %481 = vmatprep.subr.bf16.mxu0 0
    %482 = vmatpush1.bf16.msra.mxu0 0
    %483 = vmatprep.subr.bf16.mxu0 0
    %484 = vmatpush1.bf16.msra.mxu0 0
    %485 = vmatprep.subr.bf16.mxu0 0
    %486 = vmatpush1.bf16.msra.mxu0 0
    %487 = vmatprep.subr.bf16.mxu0 0
    %488 = vmatpush1.bf16.msra.mxu0 0
    %489 = vmatprep.subr.bf16.mxu0 0
    %490 = vmatpush1.bf16.msra.mxu0 0
    %491 = vmatprep.subr.bf16.mxu0 0
    %492 = vmatpush1.bf16.msra.mxu0 0
    %493 = vmatprep.subr.bf16.mxu0 0
    %494 = vmatpush1.bf16.msra.mxu0 0
    %495 = vmatprep.subr.bf16.mxu0 0
    %496 = vmatpush1.bf16.msra.mxu0 0
    %497 = vmatprep.subr.bf16.mxu0 0
    %498 = vmatpush1.bf16.msra.mxu0 0
    %499 = vmatprep.subr.bf16.mxu0 0
    %500 = vmatpush1.bf16.msra.mxu0 0
    %501 = vmatprep.subr.bf16.mxu0 0
    %502 = vmatpush1.bf16.msra.mxu0 0
    %503 = vmatprep.subr.bf16.mxu0 0
    %504 = vmatpush1.bf16.msra.mxu0 0
    %505 = vmatprep.subr.bf16.mxu0 0
    %506 = vmatpush1.bf16.msra.mxu0 0
    %507 = vmatprep.mubr.bf16.mxu0 0
    %508 = vmatmul.mubr.bf16.gmra.mrb[0].mxu0 %v80
    %v509 = vpop.f32.mrb[0].mxu0
    %v510 = vadd.f32 0.0, %v509
    %v511 = vpop.f32.mrb[0].mxu0
    %v512 = vpop.f32.mrb[0].mxu0
    %v513 = vadd.f32 0.0, %v512
    %v514 = vpop.f32.mrb[0].mxu0
    %515 = vdwg.mxu0
    %v516 = vpack.c.bf16 %v513, %v510
    %v518 = vsel %vm78, %v516, 0
    %520 = vmatprep.subr.bf16.mxu0 0
    %521 = vmatpush1.bf16.msra.mxu0 %v471
    %522 = vmatprep.subr.bf16.mxu0 0
    %523 = vmatpush1.bf16.msra.mxu0 %v472
    %524 = vmatprep.subr.bf16.mxu0 0
    %525 = vmatpush1.bf16.msra.mxu0 0
    %526 = vmatprep.subr.bf16.mxu0 0
    %527 = vmatpush1.bf16.msra.mxu0 0
    %528 = vmatprep.subr.bf16.mxu0 0
    %529 = vmatpush1.bf16.msra.mxu0 0
    %530 = vmatprep.subr.bf16.mxu0 0
    %531 = vmatpush1.bf16.msra.mxu0 0
    %532 = vmatprep.subr.bf16.mxu0 0
    %533 = vmatpush1.bf16.msra.mxu0 0
    %534 = vmatprep.subr.bf16.mxu0 0
    %535 = vmatpush1.bf16.msra.mxu0 0
    %536 = vmatprep.subr.bf16.mxu0 0
    %537 = vmatpush1.bf16.msra.mxu0 0
    %538 = vmatprep.subr.bf16.mxu0 0
    %539 = vmatpush1.bf16.msra.mxu0 0
    %540 = vmatprep.subr.bf16.mxu0 0
    %541 = vmatpush1.bf16.msra.mxu0 0
    %542 = vmatprep.subr.bf16.mxu0 0
    %543 = vmatpush1.bf16.msra.mxu0 0
    %544 = vmatprep.subr.bf16.mxu0 0
    %545 = vmatpush1.bf16.msra.mxu0 0
    %546 = vmatprep.subr.bf16.mxu0 0
    %547 = vmatpush1.bf16.msra.mxu0 0
    %548 = vmatprep.subr.bf16.mxu0 0
    %549 = vmatpush1.bf16.msra.mxu0 0
    %550 = vmatprep.subr.bf16.mxu0 0
    %551 = vmatpush1.bf16.msra.mxu0 0
    %552 = vmatprep.mubr.bf16.mxu0 0
    %553 = vmatmul.mubr.bf16.gmra.mrb[0].mxu0 %v518
    %v554 = vpop.f32.mrb[0].mxu0
    %v555 = vadd.f32 0.0, %v554
    %v556 = vpop.f32.mrb[0].mxu0
    %v557 = vpop.f32.mrb[0].mxu0
    %v558 = vadd.f32 0.0, %v557
    %v559 = vpop.f32.mrb[0].mxu0
    %560 = vdwg.mxu0
    %v561 = vpack.c.bf16 %v558, %v555
    %v563 = vsel %vm78, %v561, 0
    %565 = vmatprep.subr.bf16.mxu0 0
    %566 = vmatpush1.bf16.msra.mxu0 %v471
    %567 = vmatprep.subr.bf16.mxu0 0
    %568 = vmatpush1.bf16.msra.mxu0 %v472
    %569 = vmatprep.subr.bf16.mxu0 0
    %570 = vmatpush1.bf16.msra.mxu0 0
    %571 = vmatprep.subr.bf16.mxu0 0
    %572 = vmatpush1.bf16.msra.mxu0 0
    %573 = vmatprep.subr.bf16.mxu0 0
    %574 = vmatpush1.bf16.msra.mxu0 0
    %575 = vmatprep.subr.bf16.mxu0 0
    %576 = vmatpush1.bf16.msra.mxu0 0
    %577 = vmatprep.subr.bf16.mxu0 0
    %578 = vmatpush1.bf16.msra.mxu0 0
    %579 = vmatprep.subr.bf16.mxu0 0
    %580 = vmatpush1.bf16.msra.mxu0 0
    %581 = vmatprep.subr.bf16.mxu0 0
    %582 = vmatpush1.bf16.msra.mxu0 0
    %583 = vmatprep.subr.bf16.mxu0 0
    %584 = vmatpush1.bf16.msra.mxu0 0
    %585 = vmatprep.subr.bf16.mxu0 0
    %586 = vmatpush1.bf16.msra.mxu0 0
    %587 = vmatprep.subr.bf16.mxu0 0
    %588 = vmatpush1.bf16.msra.mxu0 0
    %589 = vmatprep.subr.bf16.mxu0 0
    %590 = vmatpush1.bf16.msra.mxu0 0
    %591 = vmatprep.subr.bf16.mxu0 0
    %592 = vmatpush1.bf16.msra.mxu0 0
    %593 = vmatprep.subr.bf16.mxu0 0
    %594 = vmatpush1.bf16.msra.mxu0 0
    %595 = vmatprep.subr.bf16.mxu0 0
    %596 = vmatpush1.bf16.msra.mxu0 0
    %597 = vmatprep.mubr.bf16.mxu0 0
    %598 = vmatmul.mubr.bf16.gmra.mrb[0].mxu0 %v563
    %v599 = vpop.f32.mrb[0].mxu0
    %v600 = vadd.f32 0.0, %v599
    %v601 = vpop.f32.mrb[0].mxu0
    %v602 = vpop.f32.mrb[0].mxu0
    %v603 = vadd.f32 0.0, %v602
    %v604 = vpop.f32.mrb[0].mxu0
    %605 = vdwg.mxu0
    %v606 = vpack.c.bf16 %v603, %v600
    %v608 = vsel %vm78, %v606, 0
    %610 = vmatprep.subr.bf16.mxu0 0
    %611 = vmatpush1.bf16.msra.mxu0 %v471
    %612 = vmatprep.subr.bf16.mxu0 0
    %613 = vmatpush1.bf16.msra.mxu0 %v472
    %614 = vmatprep.subr.bf16.mxu0 0
    %615 = vmatpush1.bf16.msra.mxu0 0
    %616 = vmatprep.subr.bf16.mxu0 0
    %617 = vmatpush1.bf16.msra.mxu0 0
    %618 = vmatprep.subr.bf16.mxu0 0
    %619 = vmatpush1.bf16.msra.mxu0 0
    %620 = vmatprep.subr.bf16.mxu0 0
    %621 = vmatpush1.bf16.msra.mxu0 0
    %622 = vmatprep.subr.bf16.mxu0 0
    %623 = vmatpush1.bf16.msra.mxu0 0
    %624 = vmatprep.subr.bf16.mxu0 0
    %625 = vmatpush1.bf16.msra.mxu0 0
    %626 = vmatprep.subr.bf16.mxu0 0
    %627 = vmatpush1.bf16.msra.mxu0 0
    %628 = vmatprep.subr.bf16.mxu0 0
    %629 = vmatpush1.bf16.msra.mxu0 0
    %630 = vmatprep.subr.bf16.mxu0 0
    %631 = vmatpush1.bf16.msra.mxu0 0
    %632 = vmatprep.subr.bf16.mxu0 0
    %633 = vmatpush1.bf16.msra.mxu0 0
    %634 = vmatprep.subr.bf16.mxu0 0
    %635 = vmatpush1.bf16.msra.mxu0 0
    %636 = vmatprep.subr.bf16.mxu0 0
    %637 = vmatpush1.bf16.msra.mxu0 0
    %638 = vmatprep.subr.bf16.mxu0 0
    %639 = vmatpush1.bf16.msra.mxu0 0
    %640 = vmatprep.subr.bf16.mxu0 0
    %641 = vmatpush1.bf16.msra.mxu0 0
    %642 = vmatprep.mubr.bf16.mxu0 0
    %643 = vmatmul.mubr.bf16.gmra.mrb[0].mxu0 %v608
    %v644 = vpop.f32.mrb[0].mxu0
    %v645 = vadd.f32 0.0, %v644
    %v646 = vpop.f32.mrb[0].mxu0
    %v647 = vpop.f32.mrb[0].mxu0
    %v648 = vadd.f32 0.0, %v647
    %v649 = vpop.f32.mrb[0].mxu0
    %650 = vdwg.mxu0
    %v652 = vlaneseq
    %v653 = vshrl.u32 %v652, 7
    %v654 = vsub.s32 0, %v653
    %v655 = vrot.slane %v71, %v654
    %v657 = vmul.f32 %v655, %v68
    %v658 = vmul.f32 %v655, %v69
    %660 = vset.pattern.permute.xlu0 0
    %661 = vperm.xlu0 %660, %v461
    %v662 = vpop.permute.xlu0 %661
    %665 = vset.pattern.permute.xlu0 0
    %666 = vperm.xlu0 %665, %v462
    %v667 = vpop.permute.xlu0 %666
    %v670 = vsel %vm377, %v459, 0
    %v673 = vsel %vm377, %v460, 0
    %675 = vmatprep.subr.mxu0 0.0
    %676 = vmatpush1.msra.mxu0 %v510
    %677 = vmatprep.subr.mxu0 0.0
    %678 = vmatpush1.msra.mxu0 %v513
    %679 = vmatprep.subr.mxu0 0.0
    %680 = vmatpush1.msra.mxu0 %v555
    %681 = vmatprep.subr.mxu0 0.0
    %682 = vmatpush1.msra.mxu0 %v558
    %683 = vmatprep.subr.mxu0 0.0
    %684 = vmatpush1.msra.mxu0 %v645
    %685 = vmatprep.subr.mxu0 0.0
    %686 = vmatpush1.msra.mxu0 %v648
    %687 = vmatprep.subr.mxu0 0.0
    %688 = vmatpush1.msra.mxu0 %v68
    %689 = vmatprep.subr.mxu0 0.0
    %690 = vmatpush1.msra.mxu0 %v69
    %691 = vmatprep.subr.mxu0 0.0
    %692 = vmatpush1.msra.mxu0 %v167
    %693 = vmatprep.subr.mxu0 0.0
    %694 = vmatpush1.msra.mxu0 %v170
    %695 = vmatprep.subr.mxu0 0.0
    %696 = vmatpush1.msra.mxu0 %v657
    %697 = vmatprep.subr.mxu0 0.0
    %698 = vmatpush1.msra.mxu0 %v658
    %699 = vmatprep.subr.mxu0 0.0
    %700 = vmatpush1.msra.mxu0 0.0
    %701 = vmatprep.subr.mxu0 0.0
    %702 = vmatpush1.msra.mxu0 0.0
    %703 = vmatprep.subr.mxu0 0.0
    %704 = vmatpush1.msra.mxu0 0.0
    %705 = vmatprep.subr.mxu0 0.0
    %706 = vmatpush1.msra.mxu0 0.0
    %707 = vmatprep.subr.mxu0 0.0
    %708 = vmatpush1.msra.mxu0 0.0
    %709 = vmatprep.subr.mxu0 0.0
    %710 = vmatpush1.msra.mxu0 0.0
    %711 = vmatprep.subr.mxu0 0.0
    %712 = vmatpush1.msra.mxu0 0.0
    %713 = vmatprep.subr.mxu0 0.0
    %714 = vmatpush1.msra.mxu0 0.0
    %715 = vmatprep.subr.mxu0 0.0
    %716 = vmatpush1.msra.mxu0 0.0
    %717 = vmatprep.subr.mxu0 0.0
    %718 = vmatpush1.msra.mxu0 0.0
    %719 = vmatprep.subr.mxu0 0.0
    %720 = vmatpush1.msra.mxu0 0.0
    %721 = vmatprep.subr.mxu0 0.0
    %722 = vmatpush1.msra.mxu0 0.0
    %723 = vmatprep.subr.mxu0 0.0
    %724 = vmatpush1.msra.mxu0 0.0
    %725 = vmatprep.subr.mxu0 0.0
    %726 = vmatpush1.msra.mxu0 0.0
    %727 = vmatprep.subr.mxu0 0.0
    %728 = vmatpush1.msra.mxu0 0.0
    %729 = vmatprep.subr.mxu0 0.0
    %730 = vmatpush1.msra.mxu0 0.0
    %731 = vmatprep.subr.mxu0 0.0
    %732 = vmatpush1.msra.mxu0 0.0
    %733 = vmatprep.subr.mxu0 0.0
    %734 = vmatpush1.msra.mxu0 0.0
    %735 = vmatprep.subr.mxu0 0.0
    %736 = vmatpush1.msra.mxu0 0.0
    %737 = vmatprep.subr.mxu0 0.0
    %738 = vmatpush1.msra.mxu0 0.0
    %739 = vmatprep.mubr.f32.mxu0 0.0
    %740 = vmatmul.mubr.f32.gmra.mrb[0].mxu0 %v670
    %v741 = vpop.f32.mrb[0].mxu0
    %v742 = vadd.f32 %v662, %v741
    %v743 = vpop.f32.mrb[0].mxu0
    %744 = vmatprep.mubr.f32.mxu0 0.0
    %745 = vmatmul.mubr.f32.gmra.mrb[0].mxu0 %v673
    %v746 = vpop.f32.mrb[0].mxu0
    %v747 = vadd.f32 %v667, %v746
    %v748 = vpop.f32.mrb[0].mxu0
    %749 = vdwg.mxu0
    %v750 = vld [vmem:[%s11] sm:$0xff]
    %v751 = vld [vmem:[%s11 + $0x8] sm:$0xff]
    %v752 = vld [vmem:[%s12] sm:$0xff]
    %v753 = vld [vmem:[%s12 + $0x8] sm:$0xff]
    %v754 = vlaneseq
    %v755 = vand.u32 %v754, 127
    %vm756 = vcmp.lt.s32.totalorder %v755, 8
    %v757 = vmax.f32 %v451, 0.0
    %v758 = vmax.f32 %v456, 0.0
    %v759 = vsel %vm756, %v757, %v451
    %v760 = vsel %vm756, %v758, %v456
    %v761 = vsel %vm128, %v759, 0.0
    %762 = vadd.xlane.f32.xlu0 %v761
    %v763 = vpop.xlane.xlu0 %762
    %v764 = vsel %vm128, %v760, 0.0
    %765 = vadd.xlane.f32.xlu0 %v764
    %v766 = vpop.xlane.xlu0 %765
    %v767 = vmul.f32 %v763, 0.0625
    %v768 = vmul.f32 %v766, 0.0625
    %v769 = vmul.f32 %v759, %v759
    %v770 = vmul.f32 %v760, %v760
    %v771 = vsel %vm128, %v769, 0.0
    %772 = vadd.xlane.f32.xlu0 %v771
    %v773 = vpop.xlane.xlu0 %772
    %v774 = vsel %vm128, %v770, 0.0
    %775 = vadd.xlane.f32.xlu0 %v774
    %v776 = vpop.xlane.xlu0 %775
    %v777 = vmul.f32 %v773, 0.0625
    %v778 = vmul.f32 %v776, 0.0625
    %v779 = vmul.f32 %v767, %v767
    %v780 = vmul.f32 %v768, %v768
    %v781 = vsub.f32 %v777, %v779
    %v782 = vsub.f32 %v778, %v780
    %v783 = vmax.f32 %v781, 0.0
    %v784 = vmax.f32 %v782, 0.0
    %v785 = vadd.f32 %v783, 1e-05
    %v786 = vadd.f32 %v784, 1e-05
    %v787 = vrsqrt.pop %v785
    %v788 = vrsqrt.pop %v786
    %v789 = vmul.f32 %v750, %v787
    %v790 = vmul.f32 %v751, %v788
    %v791 = vsub.f32 %v759, %v767
    %v792 = vsub.f32 %v760, %v768
    %794 = vset.pattern.permute.xlu0 0
    %795 = vperm.xlu0 %794, %v789
    %v796 = vpop.permute.xlu0 %795
    %799 = vset.pattern.permute.xlu0 0
    %800 = vperm.xlu0 %799, %v790
    %v801 = vpop.permute.xlu0 %800
    %v803 = vmul.f32 %v791, %v796
    %v804 = vmul.f32 %v792, %v801
    %806 = vset.pattern.permute.xlu0 0
    %807 = vperm.xlu0 %806, %v752
    %v808 = vpop.permute.xlu0 %807
    %811 = vset.pattern.permute.xlu0 0
    %812 = vperm.xlu0 %811, %v753
    %v813 = vpop.permute.xlu0 %812
    %v815 = vadd.f32 %v803, %v808
    %v816 = vadd.f32 %v804, %v813
    %v817 = vld [vmem:[%s13] sm:$0xff]
    %v818 = vld [vmem:[%s13 + $0x8] sm:$0xff]
    %v819 = vld [vmem:[%s14] sm:$0xff]
    %v820 = vld [vmem:[%s14 + $0x8] sm:$0xff]
    %v821 = vmax.f32 %v742, 0.0
    %v822 = vmax.f32 %v747, 0.0
    %v823 = vsel %vm756, %v821, %v742
    %v824 = vsel %vm756, %v822, %v747
    %v825 = vsel %vm78, %v823, 0.0
    %826 = vadd.xlane.f32.xlu0 %v825
    %v827 = vpop.xlane.xlu0 %826
    %v828 = vsel %vm78, %v824, 0.0
    %829 = vadd.xlane.f32.xlu0 %v828
    %v830 = vpop.xlane.xlu0 %829
    %v831 = vmul.f32 %v827, 0.03125
    %v832 = vmul.f32 %v830, 0.03125
    %v833 = vmul.f32 %v823, %v823
    %v834 = vmul.f32 %v824, %v824
    %v835 = vsel %vm78, %v833, 0.0
    %836 = vadd.xlane.f32.xlu0 %v835
    %v837 = vpop.xlane.xlu0 %836
    %v838 = vsel %vm78, %v834, 0.0
    %839 = vadd.xlane.f32.xlu0 %v838
    %v840 = vpop.xlane.xlu0 %839
    %v841 = vmul.f32 %v837, 0.03125
    %v842 = vmul.f32 %v840, 0.03125
    %v843 = vmul.f32 %v831, %v831
    %v844 = vmul.f32 %v832, %v832
    %v845 = vsub.f32 %v841, %v843
    %v846 = vsub.f32 %v842, %v844
    %v847 = vmax.f32 %v845, 0.0
    %v848 = vmax.f32 %v846, 0.0
    %v849 = vadd.f32 %v847, 1e-05
    %v850 = vadd.f32 %v848, 1e-05
    %v851 = vrsqrt.pop %v849
    %v852 = vrsqrt.pop %v850
    %v853 = vmul.f32 %v817, %v851
    %v854 = vmul.f32 %v818, %v852
    %v855 = vsub.f32 %v823, %v831
    %v856 = vsub.f32 %v824, %v832
    %858 = vset.pattern.permute.xlu0 0
    %859 = vperm.xlu0 %858, %v853
    %v860 = vpop.permute.xlu0 %859
    %863 = vset.pattern.permute.xlu0 0
    %864 = vperm.xlu0 %863, %v854
    %v865 = vpop.permute.xlu0 %864
    %v867 = vmul.f32 %v855, %v860
    %v868 = vmul.f32 %v856, %v865
    %870 = vset.pattern.permute.xlu0 0
    %871 = vperm.xlu0 %870, %v819
    %v872 = vpop.permute.xlu0 %871
    %875 = vset.pattern.permute.xlu0 0
    %876 = vperm.xlu0 %875, %v820
    %v877 = vpop.permute.xlu0 %876
    %v879 = vadd.f32 %v867, %v872
    %v880 = vadd.f32 %v868, %v877
    %v881 = vpack.c.bf16 %v880, %v879
    %v883 = vsel %vm78, %v881, 0
    %885 = vmatprep.subr.bf16.mxu0 0
    %886 = vmatpush1.bf16.xpose.msra.mxu0 %v83
    %887 = vmatprep.subr.bf16.mxu0 0
    %888 = vmatpush1.bf16.xpose.msra.mxu0 0
    %889 = vmatprep.subr.bf16.mxu0 0
    %890 = vmatpush1.bf16.xpose.msra.mxu0 0
    %891 = vmatprep.subr.bf16.mxu0 0
    %892 = vmatpush1.bf16.xpose.msra.mxu0 0
    %893 = vmatprep.subr.bf16.mxu0 0
    %894 = vmatpush1.bf16.xpose.msra.mxu0 0
    %895 = vmatprep.subr.bf16.mxu0 0
    %896 = vmatpush1.bf16.xpose.msra.mxu0 0
    %897 = vmatprep.subr.bf16.mxu0 0
    %898 = vmatpush1.bf16.xpose.msra.mxu0 0
    %899 = vmatprep.subr.bf16.mxu0 0
    %900 = vmatpush1.bf16.xpose.msra.mxu0 0
    %901 = vmatprep.subr.bf16.mxu0 0
    %902 = vmatpush1.bf16.xpose.msra.mxu0 0
    %903 = vmatprep.subr.bf16.mxu0 0
    %904 = vmatpush1.bf16.xpose.msra.mxu0 0
    %905 = vmatprep.subr.bf16.mxu0 0
    %906 = vmatpush1.bf16.xpose.msra.mxu0 0
    %907 = vmatprep.subr.bf16.mxu0 0
    %908 = vmatpush1.bf16.xpose.msra.mxu0 0
    %909 = vmatprep.subr.bf16.mxu0 0
    %910 = vmatpush1.bf16.xpose.msra.mxu0 0
    %911 = vmatprep.subr.bf16.mxu0 0
    %912 = vmatpush1.bf16.xpose.msra.mxu0 0
    %913 = vmatprep.subr.bf16.mxu0 0
    %914 = vmatpush1.bf16.xpose.msra.mxu0 0
    %915 = vmatprep.subr.bf16.mxu0 0
    %916 = vmatpush1.bf16.xpose.msra.mxu0 0
    %917 = vmatprep.mubr.bf16.mxu0 0
    %918 = vmatmul.mubr.bf16.gmra.mrb[0].mxu0 %v883
    %v919 = vpop.f32.mrb[0].mxu0
    %v920 = vadd.f32 0.0, %v919
    %v921 = vpop.f32.mrb[0].mxu0
    %v922 = vpop.f32.mrb[0].mxu0
    %v923 = vadd.f32 0.0, %v922
    %v924 = vpop.f32.mrb[0].mxu0
    %925 = vdwg.mxu0
    %s926 = scalar_lea.vmem %s7, 16
    %v927 = vld [vmem:[%s926] sm:$0xff]
    %v928 = vld [vmem:[%s926 + $0x8] sm:$0xff]
    %s929 = scalar_lea.vmem %s8, 16
    %v930 = vld [vmem:[%s929] sm:$0xff]
    %v931 = vld [vmem:[%s929 + $0x8] sm:$0xff]
    %v932 = vpack.c.bf16 %v816, %v815
    %v934 = vsel %vm128, %v932, 0
    %936 = vmatprep.subr.bf16.mxu0 0
    %937 = vmatpush1.bf16.msra.mxu0 %v181
    %938 = vmatprep.subr.bf16.mxu0 0
    %939 = vmatpush1.bf16.msra.mxu0 0
    %940 = vmatprep.subr.bf16.mxu0 0
    %941 = vmatpush1.bf16.msra.mxu0 0
    %942 = vmatprep.subr.bf16.mxu0 0
    %943 = vmatpush1.bf16.msra.mxu0 0
    %944 = vmatprep.subr.bf16.mxu0 0
    %945 = vmatpush1.bf16.msra.mxu0 0
    %946 = vmatprep.subr.bf16.mxu0 0
    %947 = vmatpush1.bf16.msra.mxu0 0
    %948 = vmatprep.subr.bf16.mxu0 0
    %949 = vmatpush1.bf16.msra.mxu0 0
    %950 = vmatprep.subr.bf16.mxu0 0
    %951 = vmatpush1.bf16.msra.mxu0 0
    %952 = vmatprep.subr.bf16.mxu0 0
    %953 = vmatpush1.bf16.msra.mxu0 0
    %954 = vmatprep.subr.bf16.mxu0 0
    %955 = vmatpush1.bf16.msra.mxu0 0
    %956 = vmatprep.subr.bf16.mxu0 0
    %957 = vmatpush1.bf16.msra.mxu0 0
    %958 = vmatprep.subr.bf16.mxu0 0
    %959 = vmatpush1.bf16.msra.mxu0 0
    %960 = vmatprep.subr.bf16.mxu0 0
    %961 = vmatpush1.bf16.msra.mxu0 0
    %962 = vmatprep.subr.bf16.mxu0 0
    %963 = vmatpush1.bf16.msra.mxu0 0
    %964 = vmatprep.subr.bf16.mxu0 0
    %965 = vmatpush1.bf16.msra.mxu0 0
    %966 = vmatprep.subr.bf16.mxu0 0
    %967 = vmatpush1.bf16.msra.mxu0 0
    %968 = vmatprep.mubr.bf16.mxu0 0
    %969 = vmatmul.mubr.bf16.gmra.mrb[0].mxu0 %v934
    %v970 = vpop.f32.mrb[0].mxu0
    %v971 = vadd.f32 0.0, %v970
    %v972 = vpop.f32.mrb[0].mxu0
    %v973 = vpop.f32.mrb[0].mxu0
    %v974 = vadd.f32 0.0, %v973
    %v975 = vpop.f32.mrb[0].mxu0
    %976 = vdwg.mxu0
    %v977 = vpack.c.bf16 %v974, %v971
    %v979 = vsel %vm128, %v977, 0
    %981 = vmatprep.subr.bf16.mxu0 0
    %982 = vmatpush1.bf16.msra.mxu0 %v181
    %983 = vmatprep.subr.bf16.mxu0 0
    %984 = vmatpush1.bf16.msra.mxu0 0
    %985 = vmatprep.subr.bf16.mxu0 0
    %986 = vmatpush1.bf16.msra.mxu0 0
    %987 = vmatprep.subr.bf16.mxu0 0
    %988 = vmatpush1.bf16.msra.mxu0 0
    %989 = vmatprep.subr.bf16.mxu0 0
    %990 = vmatpush1.bf16.msra.mxu0 0
    %991 = vmatprep.subr.bf16.mxu0 0
    %992 = vmatpush1.bf16.msra.mxu0 0
    %993 = vmatprep.subr.bf16.mxu0 0
    %994 = vmatpush1.bf16.msra.mxu0 0
    %995 = vmatprep.subr.bf16.mxu0 0
    %996 = vmatpush1.bf16.msra.mxu0 0
    %997 = vmatprep.subr.bf16.mxu0 0
    %998 = vmatpush1.bf16.msra.mxu0 0
    %999 = vmatprep.subr.bf16.mxu0 0
    %1000 = vmatpush1.bf16.msra.mxu0 0
    %1001 = vmatprep.subr.bf16.mxu0 0
    %1002 = vmatpush1.bf16.msra.mxu0 0
    %1003 = vmatprep.subr.bf16.mxu0 0
    %1004 = vmatpush1.bf16.msra.mxu0 0
    %1005 = vmatprep.subr.bf16.mxu0 0
    %1006 = vmatpush1.bf16.msra.mxu0 0
    %1007 = vmatprep.subr.bf16.mxu0 0
    %1008 = vmatpush1.bf16.msra.mxu0 0
    %1009 = vmatprep.subr.bf16.mxu0 0
    %1010 = vmatpush1.bf16.msra.mxu0 0
    %1011 = vmatprep.subr.bf16.mxu0 0
    %1012 = vmatpush1.bf16.msra.mxu0 0
    %1013 = vmatprep.mubr.bf16.mxu0 0
    %1014 = vmatmul.mubr.bf16.gmra.mrb[0].mxu0 %v979
    %v1015 = vpop.f32.mrb[0].mxu0
    %v1016 = vadd.f32 0.0, %v1015
    %v1017 = vpop.f32.mrb[0].mxu0
    %v1018 = vpop.f32.mrb[0].mxu0
    %v1019 = vadd.f32 0.0, %v1018
    %v1020 = vpop.f32.mrb[0].mxu0
    %1021 = vdwg.mxu0
    %v1022 = vpack.c.bf16 %v1019, %v1016
    %v1024 = vsel %vm128, %v1022, 0
    %1026 = vmatprep.subr.bf16.mxu0 0
    %1027 = vmatpush1.bf16.msra.mxu0 %v181
    %1028 = vmatprep.subr.bf16.mxu0 0
    %1029 = vmatpush1.bf16.msra.mxu0 0
    %1030 = vmatprep.subr.bf16.mxu0 0
    %1031 = vmatpush1.bf16.msra.mxu0 0
    %1032 = vmatprep.subr.bf16.mxu0 0
    %1033 = vmatpush1.bf16.msra.mxu0 0
    %1034 = vmatprep.subr.bf16.mxu0 0
    %1035 = vmatpush1.bf16.msra.mxu0 0
    %1036 = vmatprep.subr.bf16.mxu0 0
    %1037 = vmatpush1.bf16.msra.mxu0 0
    %1038 = vmatprep.subr.bf16.mxu0 0
    %1039 = vmatpush1.bf16.msra.mxu0 0
    %1040 = vmatprep.subr.bf16.mxu0 0
    %1041 = vmatpush1.bf16.msra.mxu0 0
    %1042 = vmatprep.subr.bf16.mxu0 0
    %1043 = vmatpush1.bf16.msra.mxu0 0
    %1044 = vmatprep.subr.bf16.mxu0 0
    %1045 = vmatpush1.bf16.msra.mxu0 0
    %1046 = vmatprep.subr.bf16.mxu0 0
    %1047 = vmatpush1.bf16.msra.mxu0 0
    %1048 = vmatprep.subr.bf16.mxu0 0
    %1049 = vmatpush1.bf16.msra.mxu0 0
    %1050 = vmatprep.subr.bf16.mxu0 0
    %1051 = vmatpush1.bf16.msra.mxu0 0
    %1052 = vmatprep.subr.bf16.mxu0 0
    %1053 = vmatpush1.bf16.msra.mxu0 0
    %1054 = vmatprep.subr.bf16.mxu0 0
    %1055 = vmatpush1.bf16.msra.mxu0 0
    %1056 = vmatprep.subr.bf16.mxu0 0
    %1057 = vmatpush1.bf16.msra.mxu0 0
    %1058 = vmatprep.mubr.bf16.mxu0 0
    %1059 = vmatmul.mubr.bf16.gmra.mrb[0].mxu0 %v1024
    %v1060 = vpop.f32.mrb[0].mxu0
    %v1061 = vadd.f32 0.0, %v1060
    %v1062 = vpop.f32.mrb[0].mxu0
    %v1063 = vpop.f32.mrb[0].mxu0
    %v1064 = vadd.f32 0.0, %v1063
    %v1065 = vpop.f32.mrb[0].mxu0
    %1066 = vdwg.mxu0
    %v1067 = vpack.c.bf16 %v1064, %v1061
    %v1069 = vsel %vm128, %v1067, 0
    %1071 = vmatprep.subr.bf16.mxu0 0
    %1072 = vmatpush1.bf16.msra.mxu0 %v181
    %1073 = vmatprep.subr.bf16.mxu0 0
    %1074 = vmatpush1.bf16.msra.mxu0 0
    %1075 = vmatprep.subr.bf16.mxu0 0
    %1076 = vmatpush1.bf16.msra.mxu0 0
    %1077 = vmatprep.subr.bf16.mxu0 0
    %1078 = vmatpush1.bf16.msra.mxu0 0
    %1079 = vmatprep.subr.bf16.mxu0 0
    %1080 = vmatpush1.bf16.msra.mxu0 0
    %1081 = vmatprep.subr.bf16.mxu0 0
    %1082 = vmatpush1.bf16.msra.mxu0 0
    %1083 = vmatprep.subr.bf16.mxu0 0
    %1084 = vmatpush1.bf16.msra.mxu0 0
    %1085 = vmatprep.subr.bf16.mxu0 0
    %1086 = vmatpush1.bf16.msra.mxu0 0
    %1087 = vmatprep.subr.bf16.mxu0 0
    %1088 = vmatpush1.bf16.msra.mxu0 0
    %1089 = vmatprep.subr.bf16.mxu0 0
    %1090 = vmatpush1.bf16.msra.mxu0 0
    %1091 = vmatprep.subr.bf16.mxu0 0
    %1092 = vmatpush1.bf16.msra.mxu0 0
    %1093 = vmatprep.subr.bf16.mxu0 0
    %1094 = vmatpush1.bf16.msra.mxu0 0
    %1095 = vmatprep.subr.bf16.mxu0 0
    %1096 = vmatpush1.bf16.msra.mxu0 0
    %1097 = vmatprep.subr.bf16.mxu0 0
    %1098 = vmatpush1.bf16.msra.mxu0 0
    %1099 = vmatprep.subr.bf16.mxu0 0
    %1100 = vmatpush1.bf16.msra.mxu0 0
    %1101 = vmatprep.subr.bf16.mxu0 0
    %1102 = vmatpush1.bf16.msra.mxu0 0
    %1103 = vmatprep.mubr.bf16.mxu0 0
    %1104 = vmatmul.mubr.bf16.gmra.mrb[0].mxu0 %v1069
    %v1105 = vpop.f32.mrb[0].mxu0
    %v1106 = vadd.f32 0.0, %v1105
    %v1107 = vpop.f32.mrb[0].mxu0
    %v1108 = vpop.f32.mrb[0].mxu0
    %v1109 = vadd.f32 0.0, %v1108
    %v1110 = vpop.f32.mrb[0].mxu0
    %1111 = vdwg.mxu0
    %v1112 = vmul.f32 %v363, %v815
    %v1113 = vmul.f32 %v363, %v816
    %1115 = vset.pattern.permute.xlu0 0
    %1116 = vperm.xlu0 %1115, %v930
    %v1117 = vpop.permute.xlu0 %1116
    %1120 = vset.pattern.permute.xlu0 0
    %1121 = vperm.xlu0 %1120, %v931
    %v1122 = vpop.permute.xlu0 %1121
    %v1125 = vsel %vm377, %v927, 0
    %v1128 = vsel %vm377, %v928, 0
    %1130 = vmatprep.subr.mxu0 0.0
    %1131 = vmatpush1.msra.mxu0 %v971
    %1132 = vmatprep.subr.mxu0 0.0
    %1133 = vmatpush1.msra.mxu0 %v974
    %1134 = vmatprep.subr.mxu0 0.0
    %1135 = vmatpush1.msra.mxu0 %v1016
    %1136 = vmatprep.subr.mxu0 0.0
    %1137 = vmatpush1.msra.mxu0 %v1019
    %1138 = vmatprep.subr.mxu0 0.0
    %1139 = vmatpush1.msra.mxu0 %v1106
    %1140 = vmatprep.subr.mxu0 0.0
    %1141 = vmatpush1.msra.mxu0 %v1109
    %1142 = vmatprep.subr.mxu0 0.0
    %1143 = vmatpush1.msra.mxu0 %v815
    %1144 = vmatprep.subr.mxu0 0.0
    %1145 = vmatpush1.msra.mxu0 %v816
    %1146 = vmatprep.subr.mxu0 0.0
    %1147 = vmatpush1.msra.mxu0 %v920
    %1148 = vmatprep.subr.mxu0 0.0
    %1149 = vmatpush1.msra.mxu0 %v923
    %1150 = vmatprep.subr.mxu0 0.0
    %1151 = vmatpush1.msra.mxu0 %v1112
    %1152 = vmatprep.subr.mxu0 0.0
    %1153 = vmatpush1.msra.mxu0 %v1113
    %1154 = vmatprep.subr.mxu0 0.0
    %1155 = vmatpush1.msra.mxu0 0.0
    %1156 = vmatprep.subr.mxu0 0.0
    %1157 = vmatpush1.msra.mxu0 0.0
    %1158 = vmatprep.subr.mxu0 0.0
    %1159 = vmatpush1.msra.mxu0 0.0
    %1160 = vmatprep.subr.mxu0 0.0
    %1161 = vmatpush1.msra.mxu0 0.0
    %1162 = vmatprep.subr.mxu0 0.0
    %1163 = vmatpush1.msra.mxu0 0.0
    %1164 = vmatprep.subr.mxu0 0.0
    %1165 = vmatpush1.msra.mxu0 0.0
    %1166 = vmatprep.subr.mxu0 0.0
    %1167 = vmatpush1.msra.mxu0 0.0
    %1168 = vmatprep.subr.mxu0 0.0
    %1169 = vmatpush1.msra.mxu0 0.0
    %1170 = vmatprep.subr.mxu0 0.0
    %1171 = vmatpush1.msra.mxu0 0.0
    %1172 = vmatprep.subr.mxu0 0.0
    %1173 = vmatpush1.msra.mxu0 0.0
    %1174 = vmatprep.subr.mxu0 0.0
    %1175 = vmatpush1.msra.mxu0 0.0
    %1176 = vmatprep.subr.mxu0 0.0
    %1177 = vmatpush1.msra.mxu0 0.0
    %1178 = vmatprep.subr.mxu0 0.0
    %1179 = vmatpush1.msra.mxu0 0.0
    %1180 = vmatprep.subr.mxu0 0.0
    %1181 = vmatpush1.msra.mxu0 0.0
    %1182 = vmatprep.subr.mxu0 0.0
    %1183 = vmatpush1.msra.mxu0 0.0
    %1184 = vmatprep.subr.mxu0 0.0
    %1185 = vmatpush1.msra.mxu0 0.0
    %1186 = vmatprep.subr.mxu0 0.0
    %1187 = vmatpush1.msra.mxu0 0.0
    %1188 = vmatprep.subr.mxu0 0.0
    %1189 = vmatpush1.msra.mxu0 0.0
    %1190 = vmatprep.subr.mxu0 0.0
    %1191 = vmatpush1.msra.mxu0 0.0
    %1192 = vmatprep.subr.mxu0 0.0
    %1193 = vmatpush1.msra.mxu0 0.0
    %1194 = vmatprep.mubr.f32.mxu0 0.0
    %1195 = vmatmul.mubr.f32.gmra.mrb[0].mxu0 %v1125
    %v1196 = vpop.f32.mrb[0].mxu0
    %v1197 = vadd.f32 %v1117, %v1196
    %v1198 = vpop.f32.mrb[0].mxu0
    %1199 = vmatprep.mubr.f32.mxu0 0.0
    %1200 = vmatmul.mubr.f32.gmra.mrb[0].mxu0 %v1128
    %v1201 = vpop.f32.mrb[0].mxu0
    %v1202 = vadd.f32 %v1122, %v1201
    %v1203 = vpop.f32.mrb[0].mxu0
    %1204 = vdwg.mxu0
    %s1205 = scalar_lea.vmem %s11, 16
    %v1206 = vld [vmem:[%s1205] sm:$0xff]
    %v1207 = vld [vmem:[%s1205 + $0x8] sm:$0xff]
    %s1208 = scalar_lea.vmem %s12, 16
    %v1209 = vld [vmem:[%s1208] sm:$0xff]
    %v1210 = vld [vmem:[%s1208 + $0x8] sm:$0xff]
    %v1211 = vmax.f32 %v1197, 0.0
    %v1212 = vmax.f32 %v1202, 0.0
    %v1213 = vsel %vm756, %v1211, %v1197
    %v1214 = vsel %vm756, %v1212, %v1202
    %v1215 = vsel %vm128, %v1213, 0.0
    %1216 = vadd.xlane.f32.xlu0 %v1215
    %v1217 = vpop.xlane.xlu0 %1216
    %v1218 = vsel %vm128, %v1214, 0.0
    %1219 = vadd.xlane.f32.xlu0 %v1218
    %v1220 = vpop.xlane.xlu0 %1219
    %v1221 = vmul.f32 %v1217, 0.0625
    %v1222 = vmul.f32 %v1220, 0.0625
    %v1223 = vmul.f32 %v1213, %v1213
    %v1224 = vmul.f32 %v1214, %v1214
    %v1225 = vsel %vm128, %v1223, 0.0
    %1226 = vadd.xlane.f32.xlu0 %v1225
    %v1227 = vpop.xlane.xlu0 %1226
    %v1228 = vsel %vm128, %v1224, 0.0
    %1229 = vadd.xlane.f32.xlu0 %v1228
    %v1230 = vpop.xlane.xlu0 %1229
    %v1231 = vmul.f32 %v1227, 0.0625
    %v1232 = vmul.f32 %v1230, 0.0625
    %v1233 = vmul.f32 %v1221, %v1221
    %v1234 = vmul.f32 %v1222, %v1222
    %v1235 = vsub.f32 %v1231, %v1233
    %v1236 = vsub.f32 %v1232, %v1234
    %v1237 = vmax.f32 %v1235, 0.0
    %v1238 = vmax.f32 %v1236, 0.0
    %v1239 = vadd.f32 %v1237, 1e-05
    %v1240 = vadd.f32 %v1238, 1e-05
    %v1241 = vrsqrt.pop %v1239
    %v1242 = vrsqrt.pop %v1240
    %v1243 = vmul.f32 %v1206, %v1241
    %v1244 = vmul.f32 %v1207, %v1242
    %v1245 = vsub.f32 %v1213, %v1221
    %v1246 = vsub.f32 %v1214, %v1222
    %1248 = vset.pattern.permute.xlu0 0
    %1249 = vperm.xlu0 %1248, %v1243
    %v1250 = vpop.permute.xlu0 %1249
    %1253 = vset.pattern.permute.xlu0 0
    %1254 = vperm.xlu0 %1253, %v1244
    %v1255 = vpop.permute.xlu0 %1254
    %v1257 = vmul.f32 %v1245, %v1250
    %v1258 = vmul.f32 %v1246, %v1255
    %1260 = vset.pattern.permute.xlu0 0
    %1261 = vperm.xlu0 %1260, %v1209
    %v1262 = vpop.permute.xlu0 %1261
    %1265 = vset.pattern.permute.xlu0 0
    %1266 = vperm.xlu0 %1265, %v1210
    %v1267 = vpop.permute.xlu0 %1266
    %v1269 = vadd.f32 %v1257, %v1262
    %v1270 = vadd.f32 %v1258, %v1267
    %v1271 = vld [vmem:[%s15] sm:$0xf]
    %v1272 = vld [vmem:[%s16] sm:$0xf]
    %1274 = vset.pattern.permute.xlu0 0
    %1275 = vperm.xlu0 %1274, %v1272
    %v1276 = vpop.permute.xlu0 %1275
    %v1279 = vsel %vm128, %v1271, 0
    %1281 = vmatprep.subr.mxu0 0.0
    %1282 = vmatpush1.msra.mxu0 %v1269
    %1283 = vmatprep.subr.mxu0 0.0
    %1284 = vmatpush1.msra.mxu0 %v1270
    %1285 = vmatprep.subr.mxu0 0.0
    %1286 = vmatpush1.msra.mxu0 0.0
    %1287 = vmatprep.subr.mxu0 0.0
    %1288 = vmatpush1.msra.mxu0 0.0
    %1289 = vmatprep.subr.mxu0 0.0
    %1290 = vmatpush1.msra.mxu0 0.0
    %1291 = vmatprep.subr.mxu0 0.0
    %1292 = vmatpush1.msra.mxu0 0.0
    %1293 = vmatprep.subr.mxu0 0.0
    %1294 = vmatpush1.msra.mxu0 0.0
    %1295 = vmatprep.subr.mxu0 0.0
    %1296 = vmatpush1.msra.mxu0 0.0
    %1297 = vmatprep.subr.mxu0 0.0
    %1298 = vmatpush1.msra.mxu0 0.0
    %1299 = vmatprep.subr.mxu0 0.0
    %1300 = vmatpush1.msra.mxu0 0.0
    %1301 = vmatprep.subr.mxu0 0.0
    %1302 = vmatpush1.msra.mxu0 0.0
    %1303 = vmatprep.subr.mxu0 0.0
    %1304 = vmatpush1.msra.mxu0 0.0
    %1305 = vmatprep.subr.mxu0 0.0
    %1306 = vmatpush1.msra.mxu0 0.0
    %1307 = vmatprep.subr.mxu0 0.0
    %1308 = vmatpush1.msra.mxu0 0.0
    %1309 = vmatprep.subr.mxu0 0.0
    %1310 = vmatpush1.msra.mxu0 0.0
    %1311 = vmatprep.subr.mxu0 0.0
    %1312 = vmatpush1.msra.mxu0 0.0
    %1313 = vmatprep.subr.mxu0 0.0
    %1314 = vmatpush1.msra.mxu0 0.0
    %1315 = vmatprep.subr.mxu0 0.0
    %1316 = vmatpush1.msra.mxu0 0.0
    %1317 = vmatprep.subr.mxu0 0.0
    %1318 = vmatpush1.msra.mxu0 0.0
    %1319 = vmatprep.subr.mxu0 0.0
    %1320 = vmatpush1.msra.mxu0 0.0
    %1321 = vmatprep.subr.mxu0 0.0
    %1322 = vmatpush1.msra.mxu0 0.0
    %1323 = vmatprep.subr.mxu0 0.0
    %1324 = vmatpush1.msra.mxu0 0.0
    %1325 = vmatprep.subr.mxu0 0.0
    %1326 = vmatpush1.msra.mxu0 0.0
    %1327 = vmatprep.subr.mxu0 0.0
    %1328 = vmatpush1.msra.mxu0 0.0
    %1329 = vmatprep.subr.mxu0 0.0
    %1330 = vmatpush1.msra.mxu0 0.0
    %1331 = vmatprep.subr.mxu0 0.0
    %1332 = vmatpush1.msra.mxu0 0.0
    %1333 = vmatprep.subr.mxu0 0.0
    %1334 = vmatpush1.msra.mxu0 0.0
    %1335 = vmatprep.subr.mxu0 0.0
    %1336 = vmatpush1.msra.mxu0 0.0
    %1337 = vmatprep.subr.mxu0 0.0
    %1338 = vmatpush1.msra.mxu0 0.0
    %1339 = vmatprep.subr.mxu0 0.0
    %1340 = vmatpush1.msra.mxu0 0.0
    %1341 = vmatprep.subr.mxu0 0.0
    %1342 = vmatpush1.msra.mxu0 0.0
    %1343 = vmatprep.subr.mxu0 0.0
    %1344 = vmatpush1.msra.mxu0 0.0
    %1345 = vmatprep.mubr.f32.mxu0 0.0
    %1346 = vmatmul.mubr.f32.gmra.mrb[0].mxu0 %v1279
    %v1347 = vpop.f32.mrb[0].mxu0
    %v1348 = vadd.f32 %v1276, %v1347
    %v1349 = vpop.f32.mrb[0].mxu0
    %1350 = vdwg.mxu0
    %vm1351 = vcmask 125952
    %1352 = vst.msk [vmem:[#allocation2] sm:$0xf] %vm1351, %v1348
    // Predicated region
    $region70: #{lgnn_forward.1} parent=1 // pred_check
      _
    $region71: #{lgnn_forward.1} parent=1 // pred_check_branch
      %1354 = sbr.rel (0) target = $region73
    $region72: #{lgnn_forward.1} parent=1 // pred_region
      %s1356 = ssub.s32 64, 64
      %1357 = vsyncadd [#allocation3], %s1356
      %s1359 = sshll.u32 [#allocation2], 4
      %s1360 = int_to_ptr.vmem [resolvable:$true] %s1359
      %1362 = dma.vmem_to_hbm [thread:$0]  %s1360, 64, %s17, [#allocation3]
    $region73: #{lgnn_forward.1} parent=1 // pred_fallthru
      _
    // Predicated region
    $region74: #{lgnn_forward.1} parent=1 // pred_check
      _
    $region75: #{lgnn_forward.1} parent=1 // pred_check_branch
      %1364 = sbr.rel (0) target = $region77
    $region76: #{lgnn_forward.1} parent=1 // pred_region
      %1365 = dma.done [#allocation3], 64
    $region77: #{lgnn_forward.1} parent=1 // pred_fallthru
      _
    %1366 = vsyncpa [#allocation3], 1

</llo_original>
